<compile_context>
chip_gen: v7x
topology: tpu7x:2x2x1
jax: 0.10.0
libtpu: 0.0.40
codegen_flags: <defaults>
</compile_context>

<pallas_src>
import jax
import jax.numpy as jnp
from jax import lax
from jax.experimental import pallas as pl
from jax.experimental.pallas import tpu as pltpu


def _round_up(n, m):
    return ((n + m - 1) // m) * m


def _ffm_kernel(xp_ref, w_ref, o_ref):
    # xp_ref: (tile_rows, p*in_dim)   packed batch tile (p batch rows per sublane row)
    # w_ref : (p*in_dim, p*out_dim)   block-diagonal omega.T, resident in VMEM
    # o_ref : (tile_rows, p*out_dim)  lane-dense output tile (unmasked 128-wide stores)
    xp = xp_ref[...].astype(jnp.float32)
    w = w_ref[...].astype(jnp.float32)
    # MXU contraction (vex slot) keeps the VALU free for the cosine, which is
    # the saturating unit of this kernel.  HIGHEST => f32-accurate matmul.
    z = jnp.dot(xp, w, preferred_element_type=jnp.float32,
                precision=lax.Precision.HIGHEST)
    o_ref[...] = jnp.cos(z).astype(o_ref.dtype)


def ffm_forward(x, omega, *, tile_rows=None):
    """cos(x @ omega.T) via a lane-dense, transpose-free Pallas TPU kernel.

    x:     (B, in_dim) float array
    omega: (out_dim, in_dim) float array
    returns (B, out_dim) array in x.dtype
    """
    B, in_dim = x.shape
    out_dim, in_dim_w = omega.shape
    assert in_dim == in_dim_w, "omega must be (out_dim, in_dim)"

    # ---- packing factor: make the output last dim a multiple of 128 --------
    if out_dim % 128 == 0:
        p = 1                       # already lane-dense
    elif 128 % out_dim == 0:
        p = 128 // out_dim          # pack p batch rows per output row
    else:
        p = 1                       # fallback: correct, but masked stores
    K = p * in_dim                  # packed contraction dim
    N = p * out_dim                 # packed output dim (128 in the packed case)

    # ---- pad batch only up to the packing granularity (free when aligned) --
    rows_needed = pl.cdiv(B, p)
    rows_padded = _round_up(rows_needed, 8)      # sublane-aligned row count
    B_pad = rows_padded * p
    x_in = x if B_pad == B else jnp.pad(x, ((0, B_pad - B), (0, 0)))
    x_packed = x_in.reshape(rows_padded, K)      # free row-major reshape

    # ---- block-diagonal omega.T: (K, N), built once, tiny (e.g. 12x128) ----
    w_blk = omega.T if p == 1 else jnp.kron(jnp.eye(p, dtype=omega.dtype), omega.T)

    # ---- tile heuristic -----------------------------------------------------
    bytes_per_row = 4 * (K + N)           # f32 in+out bytes per packed row
    budget = 24 * 1024 * 1024             # double-buffered in+out working set
    if tile_rows is None:
        tile_rows = 4096                  # 4096 packed rows == 16384 batch elems
    tile_rows = max(8, _round_up(int(tile_rows), 8))
    while tile_rows > 8 and 2 * bytes_per_row * tile_rows > budget:
        tile_rows = _round_up(tile_rows // 2, 8)   # also re-checks user tiles
    tile_rows = min(tile_rows, rows_padded)

    # Prefer >= 2 grid steps only when there is enough work per step to matter
    # (lets the "parallel" axis shard across v7x's two TensorCores); on 1-TC
    # v5e/v6e a forced split would only add per-step overhead, so skip it for
    # small batches.
    if rows_padded > 2048 and tile_rows >= rows_padded:
        tile_rows = _round_up(pl.cdiv(rows_padded, 2), 8)

    grid = (pl.cdiv(rows_padded, tile_rows),)

    # Explicit VMEM limit sized from the working set (v7x has only 64 MiB).
    tile_bytes = tile_rows * bytes_per_row
    w_bytes = K * N * 4
    vmem_limit = int(min(max(2 * tile_bytes + w_bytes + (4 << 20), 16 << 20),
                         32 << 20))

    out_packed = pl.pallas_call(
        _ffm_kernel,
        out_shape=jax.ShapeDtypeStruct((rows_padded, N), x.dtype),
        grid_spec=pl.GridSpec(
            grid=grid,
            in_specs=[
                # packed batch tile; K is the full (small) contraction axis
                pl.BlockSpec((tile_rows, K), lambda i: (i, 0)),
                # full block-diagonal omega, constant block index -> resident
                pl.BlockSpec((K, N), lambda i: (0, 0)),
            ],
            out_specs=pl.BlockSpec((tile_rows, N), lambda i: (i, 0)),
        ),
        compiler_params=pltpu.CompilerParams(
            dimension_semantics=("parallel",),
            vmem_limit_bytes=vmem_limit,
        ),
    )(x_packed, w_blk)

    # Free row-major reshape back to (B_pad, out_dim); slice only if we padded.
    out = out_packed.reshape(B_pad, out_dim)
    if B_pad != B:
        out = out[:B]
    return out


if __name__ == "__main__":
    key = jax.random.PRNGKey(0)
    kx, kw = jax.random.split(key)

    # PINN-style inputs: (r, theta, t) coordinates -> in_dim=3, 32 Fourier
    # features.  Batch deliberately NOT a multiple of the packed tile to
    # exercise the ragged / padded path.
    batch, in_dim, out_dim = 300, 3, 32
    std_dev = 2.0

    x = jax.random.normal(kx, (batch, in_dim), dtype=jnp.float32)
    # Deterministic parameter init, mirroring torch.randn(out_dim, in_dim) * std_dev
    omega = jax.random.normal(kw, (out_dim, in_dim), dtype=jnp.float32) * std_dev

    out = jax.block_until_ready(ffm_forward(x, omega))

    # Reference of the PyTorch semantics, computed element-wise in f32.
    ref = jnp.cos(jnp.sum(x[:, None, :] * omega[None, :, :], axis=-1))
    assert out.shape == (batch, out_dim)
    err = float(jnp.max(jnp.abs(out - ref)))
    assert jnp.allclose(out, ref, atol=1e-4, rtol=1e-4), err

    # Aligned-batch path (no pad, no slice, zero extra HBM passes).
    x2 = jax.random.normal(kx, (256, in_dim), dtype=jnp.float32)
    out2 = jax.block_until_ready(ffm_forward(x2, omega))
    ref2 = jnp.cos(jnp.sum(x2[:, None, :] * omega[None, :, :], axis=-1))
    assert out2.shape == (256, out_dim)
    assert jnp.allclose(out2, ref2, atol=1e-4, rtol=1e-4)

    print("KERNEL_OK")
</pallas_src>

<mosaic_0001>
module attributes {stable_mosaic.version = 11 : i64} {
  func.func @_ffm_kernel(%arg0: i32, %arg1: memref<80x12xf32, #tpu.memory_space<vmem>>, %arg2: memref<12x128xf32, #tpu.memory_space<vmem>>, %arg3: memref<80x128xf32, #tpu.memory_space<vmem>>) attributes {dimension_semantics = [#tpu.dimension_semantics<parallel>], iteration_bounds = array<i64: 1>, scalar_prefetch = 0 : i64, scratch_operands = 0 : i64, tpu.core_type = #tpu.core_type<tc>, window_params = [{transform_indices = @transform_0, window_bounds = array<i64: 80, 12>}, {pipeline_mode = #tpu.pipeline_mode<synchronous>, transform_indices = @transform_1, window_bounds = array<i64: 12, 128>}, {transform_indices = @transform_2, window_bounds = array<i64: 80, 128>}]} {
    %c0 = arith.constant 0 : index
    %c0_0 = arith.constant 0 : index
    %0 = vector.load %arg1[%c0, %c0_0] : memref<80x12xf32, #tpu.memory_space<vmem>>, vector<80x12xf32>
    %c0_1 = arith.constant 0 : index
    %c0_2 = arith.constant 0 : index
    %1 = vector.load %arg2[%c0_1, %c0_2] : memref<12x128xf32, #tpu.memory_space<vmem>>, vector<12x128xf32>
    %cst = arith.constant dense<0.000000e+00> : vector<80x128xf32>
    %2 = tpu.matmul %0, %1, %cst {dimension_numbers = #tpu.dot_dimension_numbers<[1], [0], [0], [1], [0, 0, 1, 1], [], []>, precision = #tpu.contract_precision<fp32>} : vector<80x12xf32>, vector<12x128xf32>, vector<80x128xf32> -> vector<80x128xf32>
    %3 = math.cos %2 : vector<80x128xf32>
    %c0_3 = arith.constant 0 : index
    %c0_4 = arith.constant 0 : index
    %4 = vector.load %arg3[%c0_3, %c0_4] : memref<80x128xf32, #tpu.memory_space<vmem>>, vector<80x128xf32>
    tpu.vector_store %arg3[%c0_3, %c0_4], %3 {strides = array<i32>} : memref<80x128xf32, #tpu.memory_space<vmem>>, vector<80x128xf32>,
    return
  }
  func.func @transform_0(%arg0: i32) -> (i32, i32) {
    %c0_i32 = arith.constant 0 : i32
    %c0_i32_0 = arith.constant 0 : i32
    return %arg0, %c0_i32 : i32, i32
  }
  func.func @transform_1(%arg0: i32) -> (i32, i32) {
    %c0_i32 = arith.constant 0 : i32
    %c0_i32_0 = arith.constant 0 : i32
    %c0_i32_1 = arith.constant 0 : i32
    return %c0_i32, %c0_i32_0 : i32, i32
  }
  func.func @transform_2(%arg0: i32) -> (i32, i32) {
    %c0_i32 = arith.constant 0 : i32
    %c0_i32_0 = arith.constant 0 : i32
    return %arg0, %c0_i32 : i32, i32
  }
}

</mosaic_0001>

<llo_original>
// kernel: tpu_custom_call.1
$region0: #{tpu_custom_call.1}
  #allocation0 [shape = 'u32[]', space=smem, size = 0x4, offset = 0x4, fixed_abs, tag = 'smem constant byte address 0x4 - core index']
  #allocation1 [shape = 'u32[144,128]{1,0:T(1,128)}', space=vmem, size = 0x12000, scoped, tag = 'internal scratch']
  %s0 = inlined_call_operand.vmem [shape: f32[80,12], index: 0, kind: input, shape index: {}]
  %s1 = inlined_call_operand.vmem [shape: f32[12,128], index: 1, kind: input, shape index: {}]
  %s2 = inlined_call_operand.hbm [shape: f32[80,128], index: 2, kind: output, shape index: {}]
  %s3 = sld [smem:[#allocation0]]
  $region18: #{tpu_custom_call.1} parent=0
    _
  %s5 = ssub.s32 1, %s3
  %s6 = scalar_select 0, %s5, %s3
  $region1: #{tpu_custom_call.1} parent=0
    #allocation2 [shape = 'u8[40960]{0}', space=vmem, size = 0xa000, scoped, tag = 'output window, operand 0, single buffered']
    #allocation3 [shape = 's32[1]{0}', space=sflag, size = 0x4, scoped, tag = 'scoped memory for tpu_custom_call.1']
    %7 = vsyncpa [#allocation3], 0
    // Predicated region
    $region2: #{tpu_custom_call.1} parent=1 // pred_check
      _
    $region3: #{tpu_custom_call.1} parent=1 // pred_check_branch
      %9 = sbr.rel (0) target = $region5
    $region4: #{tpu_custom_call.1} parent=1 // pred_region
      _
    $region5: #{tpu_custom_call.1} parent=1 // pred_fallthru
      _
    // Predicated region
    $region6: #{tpu_custom_call.1} parent=1 // pred_check
      _
    $region7: #{tpu_custom_call.1} parent=1 // pred_check_branch
      %11 = sbr.rel (0) target = $region9
    $region8: #{tpu_custom_call.1} parent=1 // pred_region
      _
    $region9: #{tpu_custom_call.1} parent=1 // pred_fallthru
      _
    %v12 = vld [vmem:[%s0] sm:$0xff]
    %v13 = vld [vmem:[%s0 + $0x8] sm:$0xff]
    %v14 = vld [vmem:[%s0 + $0x10] sm:$0xff]
    %v15 = vld [vmem:[%s0 + $0x18] sm:$0xff]
    %v16 = vld [vmem:[%s0 + $0x20] sm:$0xff]
    %v17 = vld [vmem:[%s0 + $0x28] sm:$0xff]
    %v18 = vld [vmem:[%s0 + $0x30] sm:$0xff]
    %v19 = vld [vmem:[%s0 + $0x38] sm:$0xff]
    %v20 = vld [vmem:[%s0 + $0x40] sm:$0xff]
    %v21 = vld [vmem:[%s0 + $0x48] sm:$0xff]
    %v22 = vld [vmem:[%s1] sm:$0xff]
    %v23 = vld [vmem:[%s1 + $0x8] sm:$0xf]
    %vm24 = vcmask 97280
    %v26 = vsel %vm24, %v12, 0
    %v29 = vsel %vm24, %v13, 0
    %v32 = vsel %vm24, %v14, 0
    %v35 = vsel %vm24, %v15, 0
    %v38 = vsel %vm24, %v16, 0
    %v41 = vsel %vm24, %v17, 0
    %v44 = vsel %vm24, %v18, 0
    %v47 = vsel %vm24, %v19, 0
    %v50 = vsel %vm24, %v20, 0
    %v53 = vsel %vm24, %v21, 0
    %vm55 = vcmask 1043456
    %v57 = vsel %vm55, %v23, 0
    %59 = vmatprep.subr.mxu0 0.0
    %v60 = vand.u32 %v22, 4294901760
    %61 = vmatpush1.msra.mxu0 %v60
    %62 = vmatprep.subr.mxu0 0.0
    %v63 = vand.u32 %v57, 4294901760
    %64 = vmatpush1.msra.mxu0 %v63
    %65 = vmatprep.subr.mxu0 0.0
    %66 = vmatpush1.msra.mxu0 0.0
    %67 = vmatprep.subr.mxu0 0.0
    %68 = vmatpush1.msra.mxu0 0.0
    %69 = vmatprep.subr.mxu0 0.0
    %70 = vmatpush1.msra.mxu0 0.0
    %71 = vmatprep.subr.mxu0 0.0
    %72 = vmatpush1.msra.mxu0 0.0
    %73 = vmatprep.subr.mxu0 0.0
    %74 = vmatpush1.msra.mxu0 0.0
    %75 = vmatprep.subr.mxu0 0.0
    %76 = vmatpush1.msra.mxu0 0.0
    %77 = vmatprep.subr.mxu0 0.0
    %78 = vmatpush1.msra.mxu0 0.0
    %79 = vmatprep.subr.mxu0 0.0
    %80 = vmatpush1.msra.mxu0 0.0
    %81 = vmatprep.subr.mxu0 0.0
    %82 = vmatpush1.msra.mxu0 0.0
    %83 = vmatprep.subr.mxu0 0.0
    %84 = vmatpush1.msra.mxu0 0.0
    %85 = vmatprep.subr.mxu0 0.0
    %86 = vmatpush1.msra.mxu0 0.0
    %87 = vmatprep.subr.mxu0 0.0
    %88 = vmatpush1.msra.mxu0 0.0
    %89 = vmatprep.subr.mxu0 0.0
    %90 = vmatpush1.msra.mxu0 0.0
    %91 = vmatprep.subr.mxu0 0.0
    %92 = vmatpush1.msra.mxu0 0.0
    %93 = vmatprep.subr.mxu0 0.0
    %94 = vmatpush1.msra.mxu0 0.0
    %95 = vmatprep.subr.mxu0 0.0
    %96 = vmatpush1.msra.mxu0 0.0
    %97 = vmatprep.subr.mxu0 0.0
    %98 = vmatpush1.msra.mxu0 0.0
    %99 = vmatprep.subr.mxu0 0.0
    %100 = vmatpush1.msra.mxu0 0.0
    %101 = vmatprep.subr.mxu0 0.0
    %102 = vmatpush1.msra.mxu0 0.0
    %103 = vmatprep.subr.mxu0 0.0
    %104 = vmatpush1.msra.mxu0 0.0
    %105 = vmatprep.subr.mxu0 0.0
    %106 = vmatpush1.msra.mxu0 0.0
    %107 = vmatprep.subr.mxu0 0.0
    %108 = vmatpush1.msra.mxu0 0.0
    %109 = vmatprep.subr.mxu0 0.0
    %110 = vmatpush1.msra.mxu0 0.0
    %111 = vmatprep.subr.mxu0 0.0
    %112 = vmatpush1.msra.mxu0 0.0
    %113 = vmatprep.subr.mxu0 0.0
    %114 = vmatpush1.msra.mxu0 0.0
    %115 = vmatprep.subr.mxu0 0.0
    %116 = vmatpush1.msra.mxu0 0.0
    %117 = vmatprep.subr.mxu0 0.0
    %118 = vmatpush1.msra.mxu0 0.0
    %119 = vmatprep.subr.mxu0 0.0
    %120 = vmatpush1.msra.mxu0 0.0
    %121 = vmatprep.subr.mxu0 0.0
    %122 = vmatpush1.msra.mxu0 0.0
    %123 = vmatprep.subr.mxu0 0.0
    %124 = vmatpush1.msra.mxu0 0.0
    %125 = vmatprep.mubr.f32.mxu0 0.0
    %v126 = vand.u32 %v26, 4294901760
    %v127 = vsub.f32 %v26, %v126
    %v128 = vand.u32 %v127, 4294901760
    %v129 = vsub.f32 %v127, %v128
    %v130 = vand.u32 %v129, 4294901760
    %131 = vmatmul.mubr.f32.gmra.mrb[0].mxu0 %v130
    %v132 = vpop.f32.mrb[0].mxu0
    %v133 = vadd.f32 0.0, %v132
    %v134 = vpop.f32.mrb[0].mxu0
    %135 = vmatprep.mubr.f32.mxu0 0.0
    %v136 = vand.u32 %v29, 4294901760
    %v137 = vsub.f32 %v29, %v136
    %v138 = vand.u32 %v137, 4294901760
    %v139 = vsub.f32 %v137, %v138
    %v140 = vand.u32 %v139, 4294901760
    %141 = vmatmul.mubr.f32.gmra.mrb[0].mxu0 %v140
    %v142 = vpop.f32.mrb[0].mxu0
    %v143 = vadd.f32 0.0, %v142
    %v144 = vpop.f32.mrb[0].mxu0
    %145 = vmatprep.mubr.f32.mxu0 0.0
    %v146 = vand.u32 %v32, 4294901760
    %v147 = vsub.f32 %v32, %v146
    %v148 = vand.u32 %v147, 4294901760
    %v149 = vsub.f32 %v147, %v148
    %v150 = vand.u32 %v149, 4294901760
    %151 = vmatmul.mubr.f32.gmra.mrb[0].mxu0 %v150
    %v152 = vpop.f32.mrb[0].mxu0
    %v153 = vadd.f32 0.0, %v152
    %v154 = vpop.f32.mrb[0].mxu0
    %155 = vmatprep.mubr.f32.mxu0 0.0
    %v156 = vand.u32 %v35, 4294901760
    %v157 = vsub.f32 %v35, %v156
    %v158 = vand.u32 %v157, 4294901760
    %v159 = vsub.f32 %v157, %v158
    %v160 = vand.u32 %v159, 4294901760
    %161 = vmatmul.mubr.f32.gmra.mrb[0].mxu0 %v160
    %v162 = vpop.f32.mrb[0].mxu0
    %v163 = vadd.f32 0.0, %v162
    %v164 = vpop.f32.mrb[0].mxu0
    %165 = vmatprep.mubr.f32.mxu0 0.0
    %v166 = vand.u32 %v38, 4294901760
    %v167 = vsub.f32 %v38, %v166
    %v168 = vand.u32 %v167, 4294901760
    %v169 = vsub.f32 %v167, %v168
    %v170 = vand.u32 %v169, 4294901760
    %171 = vmatmul.mubr.f32.gmra.mrb[0].mxu0 %v170
    %v172 = vpop.f32.mrb[0].mxu0
    %v173 = vadd.f32 0.0, %v172
    %v174 = vpop.f32.mrb[0].mxu0
    %175 = vmatprep.mubr.f32.mxu0 0.0
    %v176 = vand.u32 %v41, 4294901760
    %v177 = vsub.f32 %v41, %v176
    %v178 = vand.u32 %v177, 4294901760
    %v179 = vsub.f32 %v177, %v178
    %v180 = vand.u32 %v179, 4294901760
    %181 = vmatmul.mubr.f32.gmra.mrb[0].mxu0 %v180
    %v182 = vpop.f32.mrb[0].mxu0
    %v183 = vadd.f32 0.0, %v182
    %v184 = vpop.f32.mrb[0].mxu0
    %185 = vmatprep.mubr.f32.mxu0 0.0
    %v186 = vand.u32 %v44, 4294901760
    %v187 = vsub.f32 %v44, %v186
    %v188 = vand.u32 %v187, 4294901760
    %v189 = vsub.f32 %v187, %v188
    %v190 = vand.u32 %v189, 4294901760
    %191 = vmatmul.mubr.f32.gmra.mrb[0].mxu0 %v190
    %v192 = vpop.f32.mrb[0].mxu0
    %v193 = vadd.f32 0.0, %v192
    %v194 = vpop.f32.mrb[0].mxu0
    %195 = vmatprep.mubr.f32.mxu0 0.0
    %v196 = vand.u32 %v47, 4294901760
    %v197 = vsub.f32 %v47, %v196
    %v198 = vand.u32 %v197, 4294901760
    %v199 = vsub.f32 %v197, %v198
    %v200 = vand.u32 %v199, 4294901760
    %201 = vmatmul.mubr.f32.gmra.mrb[0].mxu0 %v200
    %v202 = vpop.f32.mrb[0].mxu0
    %v203 = vadd.f32 0.0, %v202
    %v204 = vpop.f32.mrb[0].mxu0
    %205 = vmatprep.mubr.f32.mxu0 0.0
    %v206 = vand.u32 %v50, 4294901760
    %v207 = vsub.f32 %v50, %v206
    %v208 = vand.u32 %v207, 4294901760
    %v209 = vsub.f32 %v207, %v208
    %v210 = vand.u32 %v209, 4294901760
    %211 = vmatmul.mubr.f32.gmra.mrb[0].mxu0 %v210
    %v212 = vpop.f32.mrb[0].mxu0
    %v213 = vadd.f32 0.0, %v212
    %v214 = vpop.f32.mrb[0].mxu0
    %215 = vmatprep.mubr.f32.mxu0 0.0
    %v216 = vand.u32 %v53, 4294901760
    %v217 = vsub.f32 %v53, %v216
    %v218 = vand.u32 %v217, 4294901760
    %v219 = vsub.f32 %v217, %v218
    %v220 = vand.u32 %v219, 4294901760
    %221 = vmatmul.mubr.f32.gmra.mrb[0].mxu0 %v220
    %v222 = vpop.f32.mrb[0].mxu0
    %v223 = vadd.f32 0.0, %v222
    %v224 = vpop.f32.mrb[0].mxu0
    %225 = vdwg.mxu0
    %226 = vmatprep.subr.mxu0 0.0
    %v227 = vand.u32 %v22, 4294901760
    %v228 = vsub.f32 %v22, %v227
    %v229 = vand.u32 %v228, 4294901760
    %v230 = vsub.f32 %v228, %v229
    %v231 = vand.u32 %v230, 4294901760
    %232 = vmatpush1.msra.mxu0 %v231
    %233 = vmatprep.subr.mxu0 0.0
    %v234 = vand.u32 %v57, 4294901760
    %v235 = vsub.f32 %v57, %v234
    %v236 = vand.u32 %v235, 4294901760
    %v237 = vsub.f32 %v235, %v236
    %v238 = vand.u32 %v237, 4294901760
    %239 = vmatpush1.msra.mxu0 %v238
    %240 = vmatprep.subr.mxu0 0.0
    %241 = vmatpush1.msra.mxu0 0.0
    %242 = vmatprep.subr.mxu0 0.0
    %243 = vmatpush1.msra.mxu0 0.0
    %244 = vmatprep.subr.mxu0 0.0
    %245 = vmatpush1.msra.mxu0 0.0
    %246 = vmatprep.subr.mxu0 0.0
    %247 = vmatpush1.msra.mxu0 0.0
    %248 = vmatprep.subr.mxu0 0.0
    %249 = vmatpush1.msra.mxu0 0.0
    %250 = vmatprep.subr.mxu0 0.0
    %251 = vmatpush1.msra.mxu0 0.0
    %252 = vmatprep.subr.mxu0 0.0
    %253 = vmatpush1.msra.mxu0 0.0
    %254 = vmatprep.subr.mxu0 0.0
    %255 = vmatpush1.msra.mxu0 0.0
    %256 = vmatprep.subr.mxu0 0.0
    %257 = vmatpush1.msra.mxu0 0.0
    %258 = vmatprep.subr.mxu0 0.0
    %259 = vmatpush1.msra.mxu0 0.0
    %260 = vmatprep.subr.mxu0 0.0
    %261 = vmatpush1.msra.mxu0 0.0
    %262 = vmatprep.subr.mxu0 0.0
    %263 = vmatpush1.msra.mxu0 0.0
    %264 = vmatprep.subr.mxu0 0.0
    %265 = vmatpush1.msra.mxu0 0.0
    %266 = vmatprep.subr.mxu0 0.0
    %267 = vmatpush1.msra.mxu0 0.0
    %268 = vmatprep.subr.mxu0 0.0
    %269 = vmatpush1.msra.mxu0 0.0
    %270 = vmatprep.subr.mxu0 0.0
    %271 = vmatpush1.msra.mxu0 0.0
    %272 = vmatprep.subr.mxu0 0.0
    %273 = vmatpush1.msra.mxu0 0.0
    %274 = vmatprep.subr.mxu0 0.0
    %275 = vmatpush1.msra.mxu0 0.0
    %276 = vmatprep.subr.mxu0 0.0
    %277 = vmatpush1.msra.mxu0 0.0
    %278 = vmatprep.subr.mxu0 0.0
    %279 = vmatpush1.msra.mxu0 0.0
    %280 = vmatprep.subr.mxu0 0.0
    %281 = vmatpush1.msra.mxu0 0.0
    %282 = vmatprep.subr.mxu0 0.0
    %283 = vmatpush1.msra.mxu0 0.0
    %284 = vmatprep.subr.mxu0 0.0
    %285 = vmatpush1.msra.mxu0 0.0
    %286 = vmatprep.subr.mxu0 0.0
    %287 = vmatpush1.msra.mxu0 0.0
    %288 = vmatprep.subr.mxu0 0.0
    %289 = vmatpush1.msra.mxu0 0.0
    %290 = vmatprep.subr.mxu0 0.0
    %291 = vmatpush1.msra.mxu0 0.0
    %292 = vmatprep.subr.mxu0 0.0
    %293 = vmatpush1.msra.mxu0 0.0
    %294 = vmatprep.subr.mxu0 0.0
    %295 = vmatpush1.msra.mxu0 0.0
    %296 = vmatprep.subr.mxu0 0.0
    %297 = vmatpush1.msra.mxu0 0.0
    %298 = vmatprep.subr.mxu0 0.0
    %299 = vmatpush1.msra.mxu0 0.0
    %300 = vmatprep.mubr.f32.mxu0 0.0
    %v301 = vand.u32 %v26, 4294901760
    %302 = vmatmul.mubr.f32.gmra.mrb[0].mxu0 %v301
    %v303 = vpop.f32.mrb[0].mxu0
    %v304 = vadd.f32 %v133, %v303
    %v305 = vpop.f32.mrb[0].mxu0
    %306 = vmatprep.mubr.f32.mxu0 0.0
    %v307 = vand.u32 %v29, 4294901760
    %308 = vmatmul.mubr.f32.gmra.mrb[0].mxu0 %v307
    %v309 = vpop.f32.mrb[0].mxu0
    %v310 = vadd.f32 %v143, %v309
    %v311 = vpop.f32.mrb[0].mxu0
    %312 = vmatprep.mubr.f32.mxu0 0.0
    %v313 = vand.u32 %v32, 4294901760
    %314 = vmatmul.mubr.f32.gmra.mrb[0].mxu0 %v313
    %v315 = vpop.f32.mrb[0].mxu0
    %v316 = vadd.f32 %v153, %v315
    %v317 = vpop.f32.mrb[0].mxu0
    %318 = vmatprep.mubr.f32.mxu0 0.0
    %v319 = vand.u32 %v35, 4294901760
    %320 = vmatmul.mubr.f32.gmra.mrb[0].mxu0 %v319
    %v321 = vpop.f32.mrb[0].mxu0
    %v322 = vadd.f32 %v163, %v321
    %v323 = vpop.f32.mrb[0].mxu0
    %324 = vmatprep.mubr.f32.mxu0 0.0
    %v325 = vand.u32 %v38, 4294901760
    %326 = vmatmul.mubr.f32.gmra.mrb[0].mxu0 %v325
    %v327 = vpop.f32.mrb[0].mxu0
    %v328 = vadd.f32 %v173, %v327
    %v329 = vpop.f32.mrb[0].mxu0
    %330 = vmatprep.mubr.f32.mxu0 0.0
    %v331 = vand.u32 %v41, 4294901760
    %332 = vmatmul.mubr.f32.gmra.mrb[0].mxu0 %v331
    %v333 = vpop.f32.mrb[0].mxu0
    %v334 = vadd.f32 %v183, %v333
    %v335 = vpop.f32.mrb[0].mxu0
    %336 = vmatprep.mubr.f32.mxu0 0.0
    %v337 = vand.u32 %v44, 4294901760
    %338 = vmatmul.mubr.f32.gmra.mrb[0].mxu0 %v337
    %v339 = vpop.f32.mrb[0].mxu0
    %v340 = vadd.f32 %v193, %v339
    %v341 = vpop.f32.mrb[0].mxu0
    %342 = vmatprep.mubr.f32.mxu0 0.0
    %v343 = vand.u32 %v47, 4294901760
    %344 = vmatmul.mubr.f32.gmra.mrb[0].mxu0 %v343
    %v345 = vpop.f32.mrb[0].mxu0
    %v346 = vadd.f32 %v203, %v345
    %v347 = vpop.f32.mrb[0].mxu0
    %348 = vmatprep.mubr.f32.mxu0 0.0
    %v349 = vand.u32 %v50, 4294901760
    %350 = vmatmul.mubr.f32.gmra.mrb[0].mxu0 %v349
    %v351 = vpop.f32.mrb[0].mxu0
    %v352 = vadd.f32 %v213, %v351
    %v353 = vpop.f32.mrb[0].mxu0
    %354 = vmatprep.mubr.f32.mxu0 0.0
    %v355 = vand.u32 %v53, 4294901760
    %356 = vmatmul.mubr.f32.gmra.mrb[0].mxu0 %v355
    %v357 = vpop.f32.mrb[0].mxu0
    %v358 = vadd.f32 %v223, %v357
    %v359 = vpop.f32.mrb[0].mxu0
    %360 = vdwg.mxu0
    %361 = vmatprep.subr.mxu0 0.0
    %v362 = vand.u32 %v22, 4294901760
    %v363 = vsub.f32 %v22, %v362
    %364 = vmatpush1.msra.mxu0 %v363
    %365 = vmatprep.subr.mxu0 0.0
    %v366 = vand.u32 %v57, 4294901760
    %v367 = vsub.f32 %v57, %v366
    %368 = vmatpush1.msra.mxu0 %v367
    %369 = vmatprep.subr.mxu0 0.0
    %370 = vmatpush1.msra.mxu0 0.0
    %371 = vmatprep.subr.mxu0 0.0
    %372 = vmatpush1.msra.mxu0 0.0
    %373 = vmatprep.subr.mxu0 0.0
    %374 = vmatpush1.msra.mxu0 0.0
    %375 = vmatprep.subr.mxu0 0.0
    %376 = vmatpush1.msra.mxu0 0.0
    %377 = vmatprep.subr.mxu0 0.0
    %378 = vmatpush1.msra.mxu0 0.0
    %379 = vmatprep.subr.mxu0 0.0
    %380 = vmatpush1.msra.mxu0 0.0
    %381 = vmatprep.subr.mxu0 0.0
    %382 = vmatpush1.msra.mxu0 0.0
    %383 = vmatprep.subr.mxu0 0.0
    %384 = vmatpush1.msra.mxu0 0.0
    %385 = vmatprep.subr.mxu0 0.0
    %386 = vmatpush1.msra.mxu0 0.0
    %387 = vmatprep.subr.mxu0 0.0
    %388 = vmatpush1.msra.mxu0 0.0
    %389 = vmatprep.subr.mxu0 0.0
    %390 = vmatpush1.msra.mxu0 0.0
    %391 = vmatprep.subr.mxu0 0.0
    %392 = vmatpush1.msra.mxu0 0.0
    %393 = vmatprep.subr.mxu0 0.0
    %394 = vmatpush1.msra.mxu0 0.0
    %395 = vmatprep.subr.mxu0 0.0
    %396 = vmatpush1.msra.mxu0 0.0
    %397 = vmatprep.subr.mxu0 0.0
    %398 = vmatpush1.msra.mxu0 0.0
    %399 = vmatprep.subr.mxu0 0.0
    %400 = vmatpush1.msra.mxu0 0.0
    %401 = vmatprep.subr.mxu0 0.0
    %402 = vmatpush1.msra.mxu0 0.0
    %403 = vmatprep.subr.mxu0 0.0
    %404 = vmatpush1.msra.mxu0 0.0
    %405 = vmatprep.subr.mxu0 0.0
    %406 = vmatpush1.msra.mxu0 0.0
    %407 = vmatprep.subr.mxu0 0.0
    %408 = vmatpush1.msra.mxu0 0.0
    %409 = vmatprep.subr.mxu0 0.0
    %410 = vmatpush1.msra.mxu0 0.0
    %411 = vmatprep.subr.mxu0 0.0
    %412 = vmatpush1.msra.mxu0 0.0
    %413 = vmatprep.subr.mxu0 0.0
    %414 = vmatpush1.msra.mxu0 0.0
    %415 = vmatprep.subr.mxu0 0.0
    %416 = vmatpush1.msra.mxu0 0.0
    %417 = vmatprep.subr.mxu0 0.0
    %418 = vmatpush1.msra.mxu0 0.0
    %419 = vmatprep.subr.mxu0 0.0
    %420 = vmatpush1.msra.mxu0 0.0
    %421 = vmatprep.subr.mxu0 0.0
    %422 = vmatpush1.msra.mxu0 0.0
    %423 = vmatprep.subr.mxu0 0.0
    %424 = vmatpush1.msra.mxu0 0.0
    %425 = vmatprep.subr.mxu0 0.0
    %426 = vmatpush1.msra.mxu0 0.0
    %427 = vmatprep.subr.mxu0 0.0
    %428 = vmatpush1.msra.mxu0 0.0
    %429 = vmatprep.mubr.f32.mxu0 0.0
    %v430 = vand.u32 %v26, 4294901760
    %v431 = vsub.f32 %v26, %v430
    %432 = vmatmul.mubr.f32.gmra.mrb[0].mxu0 %v431
    %v433 = vpop.f32.mrb[0].mxu0
    %v434 = vadd.f32 %v304, %v433
    %v435 = vpop.f32.mrb[0].mxu0
    %436 = vmatprep.mubr.f32.mxu0 0.0
    %v437 = vand.u32 %v29, 4294901760
    %v438 = vsub.f32 %v29, %v437
    %439 = vmatmul.mubr.f32.gmra.mrb[0].mxu0 %v438
    %v440 = vpop.f32.mrb[0].mxu0
    %v441 = vadd.f32 %v310, %v440
    %v442 = vpop.f32.mrb[0].mxu0
    %443 = vmatprep.mubr.f32.mxu0 0.0
    %v444 = vand.u32 %v32, 4294901760
    %v445 = vsub.f32 %v32, %v444
    %446 = vmatmul.mubr.f32.gmra.mrb[0].mxu0 %v445
    %v447 = vpop.f32.mrb[0].mxu0
    %v448 = vadd.f32 %v316, %v447
    %v449 = vpop.f32.mrb[0].mxu0
    %450 = vmatprep.mubr.f32.mxu0 0.0
    %v451 = vand.u32 %v35, 4294901760
    %v452 = vsub.f32 %v35, %v451
    %453 = vmatmul.mubr.f32.gmra.mrb[0].mxu0 %v452
    %v454 = vpop.f32.mrb[0].mxu0
    %v455 = vadd.f32 %v322, %v454
    %v456 = vpop.f32.mrb[0].mxu0
    %457 = vmatprep.mubr.f32.mxu0 0.0
    %v458 = vand.u32 %v38, 4294901760
    %v459 = vsub.f32 %v38, %v458
    %460 = vmatmul.mubr.f32.gmra.mrb[0].mxu0 %v459
    %v461 = vpop.f32.mrb[0].mxu0
    %v462 = vadd.f32 %v328, %v461
    %v463 = vpop.f32.mrb[0].mxu0
    %464 = vmatprep.mubr.f32.mxu0 0.0
    %v465 = vand.u32 %v41, 4294901760
    %v466 = vsub.f32 %v41, %v465
    %467 = vmatmul.mubr.f32.gmra.mrb[0].mxu0 %v466
    %v468 = vpop.f32.mrb[0].mxu0
    %v469 = vadd.f32 %v334, %v468
    %v470 = vpop.f32.mrb[0].mxu0
    %471 = vmatprep.mubr.f32.mxu0 0.0
    %v472 = vand.u32 %v44, 4294901760
    %v473 = vsub.f32 %v44, %v472
    %474 = vmatmul.mubr.f32.gmra.mrb[0].mxu0 %v473
    %v475 = vpop.f32.mrb[0].mxu0
    %v476 = vadd.f32 %v340, %v475
    %v477 = vpop.f32.mrb[0].mxu0
    %478 = vmatprep.mubr.f32.mxu0 0.0
    %v479 = vand.u32 %v47, 4294901760
    %v480 = vsub.f32 %v47, %v479
    %481 = vmatmul.mubr.f32.gmra.mrb[0].mxu0 %v480
    %v482 = vpop.f32.mrb[0].mxu0
    %v483 = vadd.f32 %v346, %v482
    %v484 = vpop.f32.mrb[0].mxu0
    %485 = vmatprep.mubr.f32.mxu0 0.0
    %v486 = vand.u32 %v50, 4294901760
    %v487 = vsub.f32 %v50, %v486
    %488 = vmatmul.mubr.f32.gmra.mrb[0].mxu0 %v487
    %v489 = vpop.f32.mrb[0].mxu0
    %v490 = vadd.f32 %v352, %v489
    %v491 = vpop.f32.mrb[0].mxu0
    %492 = vmatprep.mubr.f32.mxu0 0.0
    %v493 = vand.u32 %v53, 4294901760
    %v494 = vsub.f32 %v53, %v493
    %495 = vmatmul.mubr.f32.gmra.mrb[0].mxu0 %v494
    %v496 = vpop.f32.mrb[0].mxu0
    %v497 = vadd.f32 %v358, %v496
    %v498 = vpop.f32.mrb[0].mxu0
    %499 = vdwg.mxu0
    %500 = vmatprep.subr.mxu0 0.0
    %v501 = vand.u32 %v22, 4294901760
    %502 = vmatpush1.msra.mxu0 %v501
    %503 = vmatprep.subr.mxu0 0.0
    %v504 = vand.u32 %v57, 4294901760
    %505 = vmatpush1.msra.mxu0 %v504
    %506 = vmatprep.subr.mxu0 0.0
    %507 = vmatpush1.msra.mxu0 0.0
    %508 = vmatprep.subr.mxu0 0.0
    %509 = vmatpush1.msra.mxu0 0.0
    %510 = vmatprep.subr.mxu0 0.0
    %511 = vmatpush1.msra.mxu0 0.0
    %512 = vmatprep.subr.mxu0 0.0
    %513 = vmatpush1.msra.mxu0 0.0
    %514 = vmatprep.subr.mxu0 0.0
    %515 = vmatpush1.msra.mxu0 0.0
    %516 = vmatprep.subr.mxu0 0.0
    %517 = vmatpush1.msra.mxu0 0.0
    %518 = vmatprep.subr.mxu0 0.0
    %519 = vmatpush1.msra.mxu0 0.0
    %520 = vmatprep.subr.mxu0 0.0
    %521 = vmatpush1.msra.mxu0 0.0
    %522 = vmatprep.subr.mxu0 0.0
    %523 = vmatpush1.msra.mxu0 0.0
    %524 = vmatprep.subr.mxu0 0.0
    %525 = vmatpush1.msra.mxu0 0.0
    %526 = vmatprep.subr.mxu0 0.0
    %527 = vmatpush1.msra.mxu0 0.0
    %528 = vmatprep.subr.mxu0 0.0
    %529 = vmatpush1.msra.mxu0 0.0
    %530 = vmatprep.subr.mxu0 0.0
    %531 = vmatpush1.msra.mxu0 0.0
    %532 = vmatprep.subr.mxu0 0.0
    %533 = vmatpush1.msra.mxu0 0.0
    %534 = vmatprep.subr.mxu0 0.0
    %535 = vmatpush1.msra.mxu0 0.0
    %536 = vmatprep.subr.mxu0 0.0
    %537 = vmatpush1.msra.mxu0 0.0
    %538 = vmatprep.subr.mxu0 0.0
    %539 = vmatpush1.msra.mxu0 0.0
    %540 = vmatprep.subr.mxu0 0.0
    %541 = vmatpush1.msra.mxu0 0.0
    %542 = vmatprep.subr.mxu0 0.0
    %543 = vmatpush1.msra.mxu0 0.0
    %544 = vmatprep.subr.mxu0 0.0
    %545 = vmatpush1.msra.mxu0 0.0
    %546 = vmatprep.subr.mxu0 0.0
    %547 = vmatpush1.msra.mxu0 0.0
    %548 = vmatprep.subr.mxu0 0.0
    %549 = vmatpush1.msra.mxu0 0.0
    %550 = vmatprep.subr.mxu0 0.0
    %551 = vmatpush1.msra.mxu0 0.0
    %552 = vmatprep.subr.mxu0 0.0
    %553 = vmatpush1.msra.mxu0 0.0
    %554 = vmatprep.subr.mxu0 0.0
    %555 = vmatpush1.msra.mxu0 0.0
    %556 = vmatprep.subr.mxu0 0.0
    %557 = vmatpush1.msra.mxu0 0.0
    %558 = vmatprep.subr.mxu0 0.0
    %559 = vmatpush1.msra.mxu0 0.0
    %560 = vmatprep.subr.mxu0 0.0
    %561 = vmatpush1.msra.mxu0 0.0
    %562 = vmatprep.subr.mxu0 0.0
    %563 = vmatpush1.msra.mxu0 0.0
    %564 = vmatprep.subr.mxu0 0.0
    %565 = vmatpush1.msra.mxu0 0.0
    %566 = vmatprep.mubr.f32.mxu0 0.0
    %v567 = vand.u32 %v26, 4294901760
    %v568 = vsub.f32 %v26, %v567
    %v569 = vand.u32 %v568, 4294901760
    %570 = vmatmul.mubr.f32.gmra.mrb[0].mxu0 %v569
    %v571 = vpop.f32.mrb[0].mxu0
    %v572 = vadd.f32 %v434, %v571
    %v573 = vpop.f32.mrb[0].mxu0
    %574 = vmatprep.mubr.f32.mxu0 0.0
    %v575 = vand.u32 %v29, 4294901760
    %v576 = vsub.f32 %v29, %v575
    %v577 = vand.u32 %v576, 4294901760
    %578 = vmatmul.mubr.f32.gmra.mrb[0].mxu0 %v577
    %v579 = vpop.f32.mrb[0].mxu0
    %v580 = vadd.f32 %v441, %v579
    %v581 = vpop.f32.mrb[0].mxu0
    %582 = vmatprep.mubr.f32.mxu0 0.0
    %v583 = vand.u32 %v32, 4294901760
    %v584 = vsub.f32 %v32, %v583
    %v585 = vand.u32 %v584, 4294901760
    %586 = vmatmul.mubr.f32.gmra.mrb[0].mxu0 %v585
    %v587 = vpop.f32.mrb[0].mxu0
    %v588 = vadd.f32 %v448, %v587
    %v589 = vpop.f32.mrb[0].mxu0
    %590 = vmatprep.mubr.f32.mxu0 0.0
    %v591 = vand.u32 %v35, 4294901760
    %v592 = vsub.f32 %v35, %v591
    %v593 = vand.u32 %v592, 4294901760
    %594 = vmatmul.mubr.f32.gmra.mrb[0].mxu0 %v593
    %v595 = vpop.f32.mrb[0].mxu0
    %v596 = vadd.f32 %v455, %v595
    %v597 = vpop.f32.mrb[0].mxu0
    %598 = vmatprep.mubr.f32.mxu0 0.0
    %v599 = vand.u32 %v38, 4294901760
    %v600 = vsub.f32 %v38, %v599
    %v601 = vand.u32 %v600, 4294901760
    %602 = vmatmul.mubr.f32.gmra.mrb[0].mxu0 %v601
    %v603 = vpop.f32.mrb[0].mxu0
    %v604 = vadd.f32 %v462, %v603
    %v605 = vpop.f32.mrb[0].mxu0
    %606 = vmatprep.mubr.f32.mxu0 0.0
    %v607 = vand.u32 %v41, 4294901760
    %v608 = vsub.f32 %v41, %v607
    %v609 = vand.u32 %v608, 4294901760
    %610 = vmatmul.mubr.f32.gmra.mrb[0].mxu0 %v609
    %v611 = vpop.f32.mrb[0].mxu0
    %v612 = vadd.f32 %v469, %v611
    %v613 = vpop.f32.mrb[0].mxu0
    %614 = vmatprep.mubr.f32.mxu0 0.0
    %v615 = vand.u32 %v44, 4294901760
    %v616 = vsub.f32 %v44, %v615
    %v617 = vand.u32 %v616, 4294901760
    %618 = vmatmul.mubr.f32.gmra.mrb[0].mxu0 %v617
    %v619 = vpop.f32.mrb[0].mxu0
    %v620 = vadd.f32 %v476, %v619
    %v621 = vpop.f32.mrb[0].mxu0
    %622 = vmatprep.mubr.f32.mxu0 0.0
    %v623 = vand.u32 %v47, 4294901760
    %v624 = vsub.f32 %v47, %v623
    %v625 = vand.u32 %v624, 4294901760
    %626 = vmatmul.mubr.f32.gmra.mrb[0].mxu0 %v625
    %v627 = vpop.f32.mrb[0].mxu0
    %v628 = vadd.f32 %v483, %v627
    %v629 = vpop.f32.mrb[0].mxu0
    %630 = vmatprep.mubr.f32.mxu0 0.0
    %v631 = vand.u32 %v50, 4294901760
    %v632 = vsub.f32 %v50, %v631
    %v633 = vand.u32 %v632, 4294901760
    %634 = vmatmul.mubr.f32.gmra.mrb[0].mxu0 %v633
    %v635 = vpop.f32.mrb[0].mxu0
    %v636 = vadd.f32 %v490, %v635
    %v637 = vpop.f32.mrb[0].mxu0
    %638 = vmatprep.mubr.f32.mxu0 0.0
    %v639 = vand.u32 %v53, 4294901760
    %v640 = vsub.f32 %v53, %v639
    %v641 = vand.u32 %v640, 4294901760
    %642 = vmatmul.mubr.f32.gmra.mrb[0].mxu0 %v641
    %v643 = vpop.f32.mrb[0].mxu0
    %v644 = vadd.f32 %v497, %v643
    %v645 = vpop.f32.mrb[0].mxu0
    %646 = vdwg.mxu0
    %647 = vmatprep.subr.mxu0 0.0
    %v648 = vand.u32 %v22, 4294901760
    %v649 = vsub.f32 %v22, %v648
    %v650 = vand.u32 %v649, 4294901760
    %651 = vmatpush1.msra.mxu0 %v650
    %652 = vmatprep.subr.mxu0 0.0
    %v653 = vand.u32 %v57, 4294901760
    %v654 = vsub.f32 %v57, %v653
    %v655 = vand.u32 %v654, 4294901760
    %656 = vmatpush1.msra.mxu0 %v655
    %657 = vmatprep.subr.mxu0 0.0
    %658 = vmatpush1.msra.mxu0 0.0
    %659 = vmatprep.subr.mxu0 0.0
    %660 = vmatpush1.msra.mxu0 0.0
    %661 = vmatprep.subr.mxu0 0.0
    %662 = vmatpush1.msra.mxu0 0.0
    %663 = vmatprep.subr.mxu0 0.0
    %664 = vmatpush1.msra.mxu0 0.0
    %665 = vmatprep.subr.mxu0 0.0
    %666 = vmatpush1.msra.mxu0 0.0
    %667 = vmatprep.subr.mxu0 0.0
    %668 = vmatpush1.msra.mxu0 0.0
    %669 = vmatprep.subr.mxu0 0.0
    %670 = vmatpush1.msra.mxu0 0.0
    %671 = vmatprep.subr.mxu0 0.0
    %672 = vmatpush1.msra.mxu0 0.0
    %673 = vmatprep.subr.mxu0 0.0
    %674 = vmatpush1.msra.mxu0 0.0
    %675 = vmatprep.subr.mxu0 0.0
    %676 = vmatpush1.msra.mxu0 0.0
    %677 = vmatprep.subr.mxu0 0.0
    %678 = vmatpush1.msra.mxu0 0.0
    %679 = vmatprep.subr.mxu0 0.0
    %680 = vmatpush1.msra.mxu0 0.0
    %681 = vmatprep.subr.mxu0 0.0
    %682 = vmatpush1.msra.mxu0 0.0
    %683 = vmatprep.subr.mxu0 0.0
    %684 = vmatpush1.msra.mxu0 0.0
    %685 = vmatprep.subr.mxu0 0.0
    %686 = vmatpush1.msra.mxu0 0.0
    %687 = vmatprep.subr.mxu0 0.0
    %688 = vmatpush1.msra.mxu0 0.0
    %689 = vmatprep.subr.mxu0 0.0
    %690 = vmatpush1.msra.mxu0 0.0
    %691 = vmatprep.subr.mxu0 0.0
    %692 = vmatpush1.msra.mxu0 0.0
    %693 = vmatprep.subr.mxu0 0.0
    %694 = vmatpush1.msra.mxu0 0.0
    %695 = vmatprep.subr.mxu0 0.0
    %696 = vmatpush1.msra.mxu0 0.0
    %697 = vmatprep.subr.mxu0 0.0
    %698 = vmatpush1.msra.mxu0 0.0
    %699 = vmatprep.subr.mxu0 0.0
    %700 = vmatpush1.msra.mxu0 0.0
    %701 = vmatprep.subr.mxu0 0.0
    %702 = vmatpush1.msra.mxu0 0.0
    %703 = vmatprep.subr.mxu0 0.0
    %704 = vmatpush1.msra.mxu0 0.0
    %705 = vmatprep.subr.mxu0 0.0
    %706 = vmatpush1.msra.mxu0 0.0
    %707 = vmatprep.subr.mxu0 0.0
    %708 = vmatpush1.msra.mxu0 0.0
    %709 = vmatprep.subr.mxu0 0.0
    %710 = vmatpush1.msra.mxu0 0.0
    %711 = vmatprep.subr.mxu0 0.0
    %712 = vmatpush1.msra.mxu0 0.0
    %713 = vmatprep.subr.mxu0 0.0
    %714 = vmatpush1.msra.mxu0 0.0
    %715 = vmatprep.subr.mxu0 0.0
    %716 = vmatpush1.msra.mxu0 0.0
    %717 = vmatprep.mubr.f32.mxu0 0.0
    %v718 = vand.u32 %v26, 4294901760
    %719 = vmatmul.mubr.f32.gmra.mrb[0].mxu0 %v718
    %v720 = vpop.f32.mrb[0].mxu0
    %v721 = vadd.f32 %v572, %v720
    %v722 = vpop.f32.mrb[0].mxu0
    %723 = vmatprep.mubr.f32.mxu0 0.0
    %v724 = vand.u32 %v29, 4294901760
    %725 = vmatmul.mubr.f32.gmra.mrb[0].mxu0 %v724
    %v726 = vpop.f32.mrb[0].mxu0
    %v727 = vadd.f32 %v580, %v726
    %v728 = vpop.f32.mrb[0].mxu0
    %729 = vmatprep.mubr.f32.mxu0 0.0
    %v730 = vand.u32 %v32, 4294901760
    %731 = vmatmul.mubr.f32.gmra.mrb[0].mxu0 %v730
    %v732 = vpop.f32.mrb[0].mxu0
    %v733 = vadd.f32 %v588, %v732
    %v734 = vpop.f32.mrb[0].mxu0
    %735 = vmatprep.mubr.f32.mxu0 0.0
    %v736 = vand.u32 %v35, 4294901760
    %737 = vmatmul.mubr.f32.gmra.mrb[0].mxu0 %v736
    %v738 = vpop.f32.mrb[0].mxu0
    %v739 = vadd.f32 %v596, %v738
    %v740 = vpop.f32.mrb[0].mxu0
    %741 = vmatprep.mubr.f32.mxu0 0.0
    %v742 = vand.u32 %v38, 4294901760
    %743 = vmatmul.mubr.f32.gmra.mrb[0].mxu0 %v742
    %v744 = vpop.f32.mrb[0].mxu0
    %v745 = vadd.f32 %v604, %v744
    %v746 = vpop.f32.mrb[0].mxu0
    %747 = vmatprep.mubr.f32.mxu0 0.0
    %v748 = vand.u32 %v41, 4294901760
    %749 = vmatmul.mubr.f32.gmra.mrb[0].mxu0 %v748
    %v750 = vpop.f32.mrb[0].mxu0
    %v751 = vadd.f32 %v612, %v750
    %v752 = vpop.f32.mrb[0].mxu0
    %753 = vmatprep.mubr.f32.mxu0 0.0
    %v754 = vand.u32 %v44, 4294901760
    %755 = vmatmul.mubr.f32.gmra.mrb[0].mxu0 %v754
    %v756 = vpop.f32.mrb[0].mxu0
    %v757 = vadd.f32 %v620, %v756
    %v758 = vpop.f32.mrb[0].mxu0
    %759 = vmatprep.mubr.f32.mxu0 0.0
    %v760 = vand.u32 %v47, 4294901760
    %761 = vmatmul.mubr.f32.gmra.mrb[0].mxu0 %v760
    %v762 = vpop.f32.mrb[0].mxu0
    %v763 = vadd.f32 %v628, %v762
    %v764 = vpop.f32.mrb[0].mxu0
    %765 = vmatprep.mubr.f32.mxu0 0.0
    %v766 = vand.u32 %v50, 4294901760
    %767 = vmatmul.mubr.f32.gmra.mrb[0].mxu0 %v766
    %v768 = vpop.f32.mrb[0].mxu0
    %v769 = vadd.f32 %v636, %v768
    %v770 = vpop.f32.mrb[0].mxu0
    %771 = vmatprep.mubr.f32.mxu0 0.0
    %v772 = vand.u32 %v53, 4294901760
    %773 = vmatmul.mubr.f32.gmra.mrb[0].mxu0 %v772
    %v774 = vpop.f32.mrb[0].mxu0
    %v775 = vadd.f32 %v644, %v774
    %v776 = vpop.f32.mrb[0].mxu0
    %777 = vdwg.mxu0
    %778 = vmatprep.subr.mxu0 0.0
    %v779 = vand.u32 %v22, 4294901760
    %780 = vmatpush1.msra.mxu0 %v779
    %781 = vmatprep.subr.mxu0 0.0
    %v782 = vand.u32 %v57, 4294901760
    %783 = vmatpush1.msra.mxu0 %v782
    %784 = vmatprep.subr.mxu0 0.0
    %785 = vmatpush1.msra.mxu0 0.0
    %786 = vmatprep.subr.mxu0 0.0
    %787 = vmatpush1.msra.mxu0 0.0
    %788 = vmatprep.subr.mxu0 0.0
    %789 = vmatpush1.msra.mxu0 0.0
    %790 = vmatprep.subr.mxu0 0.0
    %791 = vmatpush1.msra.mxu0 0.0
    %792 = vmatprep.subr.mxu0 0.0
    %793 = vmatpush1.msra.mxu0 0.0
    %794 = vmatprep.subr.mxu0 0.0
    %795 = vmatpush1.msra.mxu0 0.0
    %796 = vmatprep.subr.mxu0 0.0
    %797 = vmatpush1.msra.mxu0 0.0
    %798 = vmatprep.subr.mxu0 0.0
    %799 = vmatpush1.msra.mxu0 0.0
    %800 = vmatprep.subr.mxu0 0.0
    %801 = vmatpush1.msra.mxu0 0.0
    %802 = vmatprep.subr.mxu0 0.0
    %803 = vmatpush1.msra.mxu0 0.0
    %804 = vmatprep.subr.mxu0 0.0
    %805 = vmatpush1.msra.mxu0 0.0
    %806 = vmatprep.subr.mxu0 0.0
    %807 = vmatpush1.msra.mxu0 0.0
    %808 = vmatprep.subr.mxu0 0.0
    %809 = vmatpush1.msra.mxu0 0.0
    %810 = vmatprep.subr.mxu0 0.0
    %811 = vmatpush1.msra.mxu0 0.0
    %812 = vmatprep.subr.mxu0 0.0
    %813 = vmatpush1.msra.mxu0 0.0
    %814 = vmatprep.subr.mxu0 0.0
    %815 = vmatpush1.msra.mxu0 0.0
    %816 = vmatprep.subr.mxu0 0.0
    %817 = vmatpush1.msra.mxu0 0.0
    %818 = vmatprep.subr.mxu0 0.0
    %819 = vmatpush1.msra.mxu0 0.0
    %820 = vmatprep.subr.mxu0 0.0
    %821 = vmatpush1.msra.mxu0 0.0
    %822 = vmatprep.subr.mxu0 0.0
    %823 = vmatpush1.msra.mxu0 0.0
    %824 = vmatprep.subr.mxu0 0.0
    %825 = vmatpush1.msra.mxu0 0.0
    %826 = vmatprep.subr.mxu0 0.0
    %827 = vmatpush1.msra.mxu0 0.0
    %828 = vmatprep.subr.mxu0 0.0
    %829 = vmatpush1.msra.mxu0 0.0
    %830 = vmatprep.subr.mxu0 0.0
    %831 = vmatpush1.msra.mxu0 0.0
    %832 = vmatprep.subr.mxu0 0.0
    %833 = vmatpush1.msra.mxu0 0.0
    %834 = vmatprep.subr.mxu0 0.0
    %835 = vmatpush1.msra.mxu0 0.0
    %836 = vmatprep.subr.mxu0 0.0
    %837 = vmatpush1.msra.mxu0 0.0
    %838 = vmatprep.subr.mxu0 0.0
    %839 = vmatpush1.msra.mxu0 0.0
    %840 = vmatprep.subr.mxu0 0.0
    %841 = vmatpush1.msra.mxu0 0.0
    %842 = vmatprep.subr.mxu0 0.0
    %843 = vmatpush1.msra.mxu0 0.0
    %844 = vmatprep.mubr.f32.mxu0 0.0
    %v845 = vand.u32 %v26, 4294901760
    %846 = vmatmul.mubr.f32.gmra.mrb[0].mxu0 %v845
    %v847 = vpop.f32.mrb[0].mxu0
    %v848 = vadd.f32 %v721, %v847
    %v849 = vpop.f32.mrb[0].mxu0
    %850 = vmatprep.mubr.f32.mxu0 0.0
    %v851 = vand.u32 %v29, 4294901760
    %852 = vmatmul.mubr.f32.gmra.mrb[0].mxu0 %v851
    %v853 = vpop.f32.mrb[0].mxu0
    %v854 = vadd.f32 %v727, %v853
    %v855 = vpop.f32.mrb[0].mxu0
    %856 = vmatprep.mubr.f32.mxu0 0.0
    %v857 = vand.u32 %v32, 4294901760
    %858 = vmatmul.mubr.f32.gmra.mrb[0].mxu0 %v857
    %v859 = vpop.f32.mrb[0].mxu0
    %v860 = vadd.f32 %v733, %v859
    %v861 = vpop.f32.mrb[0].mxu0
    %862 = vmatprep.mubr.f32.mxu0 0.0
    %v863 = vand.u32 %v35, 4294901760
    %864 = vmatmul.mubr.f32.gmra.mrb[0].mxu0 %v863
    %v865 = vpop.f32.mrb[0].mxu0
    %v866 = vadd.f32 %v739, %v865
    %v867 = vpop.f32.mrb[0].mxu0
    %868 = vmatprep.mubr.f32.mxu0 0.0
    %v869 = vand.u32 %v38, 4294901760
    %870 = vmatmul.mubr.f32.gmra.mrb[0].mxu0 %v869
    %v871 = vpop.f32.mrb[0].mxu0
    %v872 = vadd.f32 %v745, %v871
    %v873 = vpop.f32.mrb[0].mxu0
    %874 = vmatprep.mubr.f32.mxu0 0.0
    %v875 = vand.u32 %v41, 4294901760
    %876 = vmatmul.mubr.f32.gmra.mrb[0].mxu0 %v875
    %v877 = vpop.f32.mrb[0].mxu0
    %v878 = vadd.f32 %v751, %v877
    %v879 = vpop.f32.mrb[0].mxu0
    %880 = vmatprep.mubr.f32.mxu0 0.0
    %v881 = vand.u32 %v44, 4294901760
    %882 = vmatmul.mubr.f32.gmra.mrb[0].mxu0 %v881
    %v883 = vpop.f32.mrb[0].mxu0
    %v884 = vadd.f32 %v757, %v883
    %v885 = vpop.f32.mrb[0].mxu0
    %886 = vmatprep.mubr.f32.mxu0 0.0
    %v887 = vand.u32 %v47, 4294901760
    %888 = vmatmul.mubr.f32.gmra.mrb[0].mxu0 %v887
    %v889 = vpop.f32.mrb[0].mxu0
    %v890 = vadd.f32 %v763, %v889
    %v891 = vpop.f32.mrb[0].mxu0
    %892 = vmatprep.mubr.f32.mxu0 0.0
    %v893 = vand.u32 %v50, 4294901760
    %894 = vmatmul.mubr.f32.gmra.mrb[0].mxu0 %v893
    %v895 = vpop.f32.mrb[0].mxu0
    %v896 = vadd.f32 %v769, %v895
    %v897 = vpop.f32.mrb[0].mxu0
    %898 = vmatprep.mubr.f32.mxu0 0.0
    %v899 = vand.u32 %v53, 4294901760
    %900 = vmatmul.mubr.f32.gmra.mrb[0].mxu0 %v899
    %v901 = vpop.f32.mrb[0].mxu0
    %v902 = vadd.f32 %v775, %v901
    %v903 = vpop.f32.mrb[0].mxu0
    %904 = vdwg.mxu0
    %v905 = vand.u32 2147483647, %v848
    %vm906 = vcmp.le.f32.partialorder %v905, 0.7853982
    %vm907 = vcmp.lt.s32.totalorder %v848, 0
    %v908 = vand.u32 %v848, 2139095040
    %v909 = vshrl.u32 %v908, 23
    %v910 = vsub.s32 %v909, 127
    %v911 = vand.u32 2147483647, %v848
    %v912 = vand.u32 %v911, 8388607
    %v913 = vor.u32 %v912, 8388608
    %v914 = vsub.s32 0, %v913
    %v915 = vadd.s32 %v910, 1
    %vm916 = vcmp.gt.s32.totalorder %v915, 0
    %v917 = vsel %vm916, %v915, 0
    %v918 = vshrl.u32 %v917, 5
    %v919 = vand.u32 %v917, 31
    %v920 = vsub.s32 32, %v919
    %v921 = vshrl.u32 683565275, %v920
    %v922 = vshll.u32 683565275, %v919
    %v923 = vshrl.u32 2475754826, %v920
    %v924 = vor.u32 %v922, %v923
    %v925 = vshll.u32 2475754826, %v919
    %v926 = vshrl.u32 2131351028, %v920
    %v927 = vor.u32 %v925, %v926
    %v928 = vshll.u32 2131351028, %v919
    %v929 = vshrl.u32 2102212464, %v920
    %v930 = vor.u32 %v928, %v929
    %v931 = vshll.u32 2102212464, %v919
    %v932 = vshrl.u32 920167782, %v920
    %v933 = vor.u32 %v931, %v932
    %v934 = vshll.u32 920167782, %v919
    %v935 = vshrl.u32 1326507024, %v920
    %v936 = vor.u32 %v934, %v935
    %vm937 = vcmp.lt.s32.totalorder %v918, 1
    %vm938 = vcmp.lt.s32.totalorder %v918, 2
    %vm939 = vcmp.lt.s32.totalorder %v918, 3
    %vm940 = vcmp.lt.s32.totalorder %v918, 4
    %v941 = vsel %vm937, %v921, %v924
    %v942 = vsel %vm940, %v930, 2102212464
    %v943 = vsel %vm939, %v927, %v942
    %v944 = vsel %vm938, %v941, %v943
    %v945 = vsel %vm937, %v924, %v927
    %v946 = vsel %vm940, %v933, 920167782
    %v947 = vsel %vm939, %v930, %v946
    %v948 = vsel %vm938, %v945, %v947
    %v949 = vsel %vm937, %v927, %v930
    %v950 = vsel %vm940, %v936, 1326507024
    %v951 = vsel %vm939, %v933, %v950
    %v952 = vsel %vm938, %v949, %v951
    %v953 = vshll.u32 %v913, 8
    %v954 = vmul.u32.u64.compose %v953, %v952
    %v955 = vextract.low.u32 %v954
    %v956 = vextract.high.u32 %v954
    %v957 = vmul.u32.u64.compose %v953, %v948
    %v958 = vextract.low.u32 %v957
    %v959 = vextract.high.u32 %v957
    %v960 = vmul.u32 %v953, %v944
    %v961 = vadd.s32 %v956, %v958
    %vm962 = vc.u32 %v956, %v958
    %v963 = vadd.s32 %v959, 1
    %v964 = vsel %vm962, %v963, %v959
    %v965 = vadd.s32 %v960, %v964
    %v966 = vadd.s32 %v965, 536870912
    %v967 = vshrl.u32 %v966, 30
    %v968 = vshll.u32 %v967, 30
    %v969 = vsub.s32 %v965, %v968
    %vm970 = vcmp.lt.s32.totalorder %v969, 0
    %v971 = vsub.s32 0, %v969
    %v972 = vsel %vm970, %v971, %v969
    %v973 = vclz %v972
    %v974 = vsub.s32 %v973, 2
    %vm975 = vcmp.gt.s32.totalorder 0, %v974
    %v976 = vsel %vm975, 0, %v974
    %v977 = vsub.s32 32, %v976
    %v978 = vshll.u32 %v969, %v976
    %v979 = vshrl.u32 %v961, %v977
    %v980 = vor.u32 %v978, %v979
    %v981 = vsub.s32 4294967266, %v976
    %v982 = vadd.s32 %v981, 127
    %v983 = vshll.u32 %v982, 23
    %v984 = vor.u32 4788187, %v983
    %v985 = vand.u32 2147483647, %v984
    %v987 = vcvt.s32.f32 %v980
    %v988 = vmul.f32 %v987, %v985
    %v989 = vxor.u32 %v988, 2147483648
    %v990 = vsel %vm907, %v989, %v988
    %v991 = vsub.s32 4, %v967
    %v992 = vsel %vm907, %v991, %v967
    %v993 = vsel %vm906, %v848, %v990
    %v994 = vsel %vm906, 0, %v992
    %v995 = vcosq.f32.pop %v993
    %v996 = vsinq.f32.pop %v993
    %vm997 = vweird.f32 %v848
    %v998 = vand.u32 %v994, 3
    %vm999 = vcmp.lt.s32.totalorder %v998, 2
    %vm1000 = vcmp.eq.s32.totalorder %v998, 0
    %v1001 = vxor.u32 %v996, 2147483648
    %v1002 = vsel %vm1000, %v995, %v1001
    %vm1003 = vcmp.eq.s32.totalorder %v998, 2
    %v1004 = vxor.u32 %v995, 2147483648
    %v1005 = vsel %vm1003, %v1004, %v996
    %v1006 = vsel %vm999, %v1002, %v1005
    %v1007 = vsel %vm997, nan, %v1006
    %v1008 = vand.u32 2147483647, %v854
    %vm1009 = vcmp.le.f32.partialorder %v1008, 0.7853982
    %vm1010 = vcmp.lt.s32.totalorder %v854, 0
    %v1011 = vand.u32 %v854, 2139095040
    %v1012 = vshrl.u32 %v1011, 23
    %v1013 = vsub.s32 %v1012, 127
    %v1014 = vand.u32 2147483647, %v854
    %v1015 = vand.u32 %v1014, 8388607
    %v1016 = vor.u32 %v1015, 8388608
    %v1017 = vsub.s32 0, %v1016
    %v1018 = vadd.s32 %v1013, 1
    %vm1019 = vcmp.gt.s32.totalorder %v1018, 0
    %v1020 = vsel %vm1019, %v1018, 0
    %v1021 = vshrl.u32 %v1020, 5
    %v1022 = vand.u32 %v1020, 31
    %v1023 = vsub.s32 32, %v1022
    %v1024 = vshrl.u32 683565275, %v1023
    %v1025 = vshll.u32 683565275, %v1022
    %v1026 = vshrl.u32 2475754826, %v1023
    %v1027 = vor.u32 %v1025, %v1026
    %v1028 = vshll.u32 2475754826, %v1022
    %v1029 = vshrl.u32 2131351028, %v1023
    %v1030 = vor.u32 %v1028, %v1029
    %v1031 = vshll.u32 2131351028, %v1022
    %v1032 = vshrl.u32 2102212464, %v1023
    %v1033 = vor.u32 %v1031, %v1032
    %v1034 = vshll.u32 2102212464, %v1022
    %v1035 = vshrl.u32 920167782, %v1023
    %v1036 = vor.u32 %v1034, %v1035
    %v1037 = vshll.u32 920167782, %v1022
    %v1038 = vshrl.u32 1326507024, %v1023
    %v1039 = vor.u32 %v1037, %v1038
    %vm1040 = vcmp.lt.s32.totalorder %v1021, 1
    %vm1041 = vcmp.lt.s32.totalorder %v1021, 2
    %vm1042 = vcmp.lt.s32.totalorder %v1021, 3
    %vm1043 = vcmp.lt.s32.totalorder %v1021, 4
    %v1044 = vsel %vm1040, %v1024, %v1027
    %v1045 = vsel %vm1043, %v1033, 2102212464
    %v1046 = vsel %vm1042, %v1030, %v1045
    %v1047 = vsel %vm1041, %v1044, %v1046
    %v1048 = vsel %vm1040, %v1027, %v1030
    %v1049 = vsel %vm1043, %v1036, 920167782
    %v1050 = vsel %vm1042, %v1033, %v1049
    %v1051 = vsel %vm1041, %v1048, %v1050
    %v1052 = vsel %vm1040, %v1030, %v1033
    %v1053 = vsel %vm1043, %v1039, 1326507024
    %v1054 = vsel %vm1042, %v1036, %v1053
    %v1055 = vsel %vm1041, %v1052, %v1054
    %v1056 = vshll.u32 %v1016, 8
    %v1057 = vmul.u32.u64.compose %v1056, %v1055
    %v1058 = vextract.low.u32 %v1057
    %v1059 = vextract.high.u32 %v1057
    %v1060 = vmul.u32.u64.compose %v1056, %v1051
    %v1061 = vextract.low.u32 %v1060
    %v1062 = vextract.high.u32 %v1060
    %v1063 = vmul.u32 %v1056, %v1047
    %v1064 = vadd.s32 %v1059, %v1061
    %vm1065 = vc.u32 %v1059, %v1061
    %v1066 = vadd.s32 %v1062, 1
    %v1067 = vsel %vm1065, %v1066, %v1062
    %v1068 = vadd.s32 %v1063, %v1067
    %v1069 = vadd.s32 %v1068, 536870912
    %v1070 = vshrl.u32 %v1069, 30
    %v1071 = vshll.u32 %v1070, 30
    %v1072 = vsub.s32 %v1068, %v1071
    %vm1073 = vcmp.lt.s32.totalorder %v1072, 0
    %v1074 = vsub.s32 0, %v1072
    %v1075 = vsel %vm1073, %v1074, %v1072
    %v1076 = vclz %v1075
    %v1077 = vsub.s32 %v1076, 2
    %vm1078 = vcmp.gt.s32.totalorder 0, %v1077
    %v1079 = vsel %vm1078, 0, %v1077
    %v1080 = vsub.s32 32, %v1079
    %v1081 = vshll.u32 %v1072, %v1079
    %v1082 = vshrl.u32 %v1064, %v1080
    %v1083 = vor.u32 %v1081, %v1082
    %v1084 = vsub.s32 4294967266, %v1079
    %v1085 = vadd.s32 %v1084, 127
    %v1086 = vshll.u32 %v1085, 23
    %v1087 = vor.u32 4788187, %v1086
    %v1088 = vand.u32 2147483647, %v1087
    %v1090 = vcvt.s32.f32 %v1083
    %v1091 = vmul.f32 %v1090, %v1088
    %v1092 = vxor.u32 %v1091, 2147483648
    %v1093 = vsel %vm1010, %v1092, %v1091
    %v1094 = vsub.s32 4, %v1070
    %v1095 = vsel %vm1010, %v1094, %v1070
    %v1096 = vsel %vm1009, %v854, %v1093
    %v1097 = vsel %vm1009, 0, %v1095
    %v1098 = vcosq.f32.pop %v1096
    %v1099 = vsinq.f32.pop %v1096
    %vm1100 = vweird.f32 %v854
    %v1101 = vand.u32 %v1097, 3
    %vm1102 = vcmp.lt.s32.totalorder %v1101, 2
    %vm1103 = vcmp.eq.s32.totalorder %v1101, 0
    %v1104 = vxor.u32 %v1099, 2147483648
    %v1105 = vsel %vm1103, %v1098, %v1104
    %vm1106 = vcmp.eq.s32.totalorder %v1101, 2
    %v1107 = vxor.u32 %v1098, 2147483648
    %v1108 = vsel %vm1106, %v1107, %v1099
    %v1109 = vsel %vm1102, %v1105, %v1108
    %v1110 = vsel %vm1100, nan, %v1109
    %v1111 = vand.u32 2147483647, %v860
    %vm1112 = vcmp.le.f32.partialorder %v1111, 0.7853982
    %vm1113 = vcmp.lt.s32.totalorder %v860, 0
    %v1114 = vand.u32 %v860, 2139095040
    %v1115 = vshrl.u32 %v1114, 23
    %v1116 = vsub.s32 %v1115, 127
    %v1117 = vand.u32 2147483647, %v860
    %v1118 = vand.u32 %v1117, 8388607
    %v1119 = vor.u32 %v1118, 8388608
    %v1120 = vsub.s32 0, %v1119
    %v1121 = vadd.s32 %v1116, 1
    %vm1122 = vcmp.gt.s32.totalorder %v1121, 0
    %v1123 = vsel %vm1122, %v1121, 0
    %v1124 = vshrl.u32 %v1123, 5
    %v1125 = vand.u32 %v1123, 31
    %v1126 = vsub.s32 32, %v1125
    %v1127 = vshrl.u32 683565275, %v1126
    %v1128 = vshll.u32 683565275, %v1125
    %v1129 = vshrl.u32 2475754826, %v1126
    %v1130 = vor.u32 %v1128, %v1129
    %v1131 = vshll.u32 2475754826, %v1125
    %v1132 = vshrl.u32 2131351028, %v1126
    %v1133 = vor.u32 %v1131, %v1132
    %v1134 = vshll.u32 2131351028, %v1125
    %v1135 = vshrl.u32 2102212464, %v1126
    %v1136 = vor.u32 %v1134, %v1135
    %v1137 = vshll.u32 2102212464, %v1125
    %v1138 = vshrl.u32 920167782, %v1126
    %v1139 = vor.u32 %v1137, %v1138
    %v1140 = vshll.u32 920167782, %v1125
    %v1141 = vshrl.u32 1326507024, %v1126
    %v1142 = vor.u32 %v1140, %v1141
    %vm1143 = vcmp.lt.s32.totalorder %v1124, 1
    %vm1144 = vcmp.lt.s32.totalorder %v1124, 2
    %vm1145 = vcmp.lt.s32.totalorder %v1124, 3
    %vm1146 = vcmp.lt.s32.totalorder %v1124, 4
    %v1147 = vsel %vm1143, %v1127, %v1130
    %v1148 = vsel %vm1146, %v1136, 2102212464
    %v1149 = vsel %vm1145, %v1133, %v1148
    %v1150 = vsel %vm1144, %v1147, %v1149
    %v1151 = vsel %vm1143, %v1130, %v1133
    %v1152 = vsel %vm1146, %v1139, 920167782
    %v1153 = vsel %vm1145, %v1136, %v1152
    %v1154 = vsel %vm1144, %v1151, %v1153
    %v1155 = vsel %vm1143, %v1133, %v1136
    %v1156 = vsel %vm1146, %v1142, 1326507024
    %v1157 = vsel %vm1145, %v1139, %v1156
    %v1158 = vsel %vm1144, %v1155, %v1157
    %v1159 = vshll.u32 %v1119, 8
    %v1160 = vmul.u32.u64.compose %v1159, %v1158
    %v1161 = vextract.low.u32 %v1160
    %v1162 = vextract.high.u32 %v1160
    %v1163 = vmul.u32.u64.compose %v1159, %v1154
    %v1164 = vextract.low.u32 %v1163
    %v1165 = vextract.high.u32 %v1163
    %v1166 = vmul.u32 %v1159, %v1150
    %v1167 = vadd.s32 %v1162, %v1164
    %vm1168 = vc.u32 %v1162, %v1164
    %v1169 = vadd.s32 %v1165, 1
    %v1170 = vsel %vm1168, %v1169, %v1165
    %v1171 = vadd.s32 %v1166, %v1170
    %v1172 = vadd.s32 %v1171, 536870912
    %v1173 = vshrl.u32 %v1172, 30
    %v1174 = vshll.u32 %v1173, 30
    %v1175 = vsub.s32 %v1171, %v1174
    %vm1176 = vcmp.lt.s32.totalorder %v1175, 0
    %v1177 = vsub.s32 0, %v1175
    %v1178 = vsel %vm1176, %v1177, %v1175
    %v1179 = vclz %v1178
    %v1180 = vsub.s32 %v1179, 2
    %vm1181 = vcmp.gt.s32.totalorder 0, %v1180
    %v1182 = vsel %vm1181, 0, %v1180
    %v1183 = vsub.s32 32, %v1182
    %v1184 = vshll.u32 %v1175, %v1182
    %v1185 = vshrl.u32 %v1167, %v1183
    %v1186 = vor.u32 %v1184, %v1185
    %v1187 = vsub.s32 4294967266, %v1182
    %v1188 = vadd.s32 %v1187, 127
    %v1189 = vshll.u32 %v1188, 23
    %v1190 = vor.u32 4788187, %v1189
    %v1191 = vand.u32 2147483647, %v1190
    %v1193 = vcvt.s32.f32 %v1186
    %v1194 = vmul.f32 %v1193, %v1191
    %v1195 = vxor.u32 %v1194, 2147483648
    %v1196 = vsel %vm1113, %v1195, %v1194
    %v1197 = vsub.s32 4, %v1173
    %v1198 = vsel %vm1113, %v1197, %v1173
    %v1199 = vsel %vm1112, %v860, %v1196
    %v1200 = vsel %vm1112, 0, %v1198
    %v1201 = vcosq.f32.pop %v1199
    %v1202 = vsinq.f32.pop %v1199
    %vm1203 = vweird.f32 %v860
    %v1204 = vand.u32 %v1200, 3
    %vm1205 = vcmp.lt.s32.totalorder %v1204, 2
    %vm1206 = vcmp.eq.s32.totalorder %v1204, 0
    %v1207 = vxor.u32 %v1202, 2147483648
    %v1208 = vsel %vm1206, %v1201, %v1207
    %vm1209 = vcmp.eq.s32.totalorder %v1204, 2
    %v1210 = vxor.u32 %v1201, 2147483648
    %v1211 = vsel %vm1209, %v1210, %v1202
    %v1212 = vsel %vm1205, %v1208, %v1211
    %v1213 = vsel %vm1203, nan, %v1212
    %v1214 = vand.u32 2147483647, %v866
    %vm1215 = vcmp.le.f32.partialorder %v1214, 0.7853982
    %vm1216 = vcmp.lt.s32.totalorder %v866, 0
    %v1217 = vand.u32 %v866, 2139095040
    %v1218 = vshrl.u32 %v1217, 23
    %v1219 = vsub.s32 %v1218, 127
    %v1220 = vand.u32 2147483647, %v866
    %v1221 = vand.u32 %v1220, 8388607
    %v1222 = vor.u32 %v1221, 8388608
    %v1223 = vsub.s32 0, %v1222
    %v1224 = vadd.s32 %v1219, 1
    %vm1225 = vcmp.gt.s32.totalorder %v1224, 0
    %v1226 = vsel %vm1225, %v1224, 0
    %v1227 = vshrl.u32 %v1226, 5
    %v1228 = vand.u32 %v1226, 31
    %v1229 = vsub.s32 32, %v1228
    %v1230 = vshrl.u32 683565275, %v1229
    %v1231 = vshll.u32 683565275, %v1228
    %v1232 = vshrl.u32 2475754826, %v1229
    %v1233 = vor.u32 %v1231, %v1232
    %v1234 = vshll.u32 2475754826, %v1228
    %v1235 = vshrl.u32 2131351028, %v1229
    %v1236 = vor.u32 %v1234, %v1235
    %v1237 = vshll.u32 2131351028, %v1228
    %v1238 = vshrl.u32 2102212464, %v1229
    %v1239 = vor.u32 %v1237, %v1238
    %v1240 = vshll.u32 2102212464, %v1228
    %v1241 = vshrl.u32 920167782, %v1229
    %v1242 = vor.u32 %v1240, %v1241
    %v1243 = vshll.u32 920167782, %v1228
    %v1244 = vshrl.u32 1326507024, %v1229
    %v1245 = vor.u32 %v1243, %v1244
    %vm1246 = vcmp.lt.s32.totalorder %v1227, 1
    %vm1247 = vcmp.lt.s32.totalorder %v1227, 2
    %vm1248 = vcmp.lt.s32.totalorder %v1227, 3
    %vm1249 = vcmp.lt.s32.totalorder %v1227, 4
    %v1250 = vsel %vm1246, %v1230, %v1233
    %v1251 = vsel %vm1249, %v1239, 2102212464
    %v1252 = vsel %vm1248, %v1236, %v1251
    %v1253 = vsel %vm1247, %v1250, %v1252
    %v1254 = vsel %vm1246, %v1233, %v1236
    %v1255 = vsel %vm1249, %v1242, 920167782
    %v1256 = vsel %vm1248, %v1239, %v1255
    %v1257 = vsel %vm1247, %v1254, %v1256
    %v1258 = vsel %vm1246, %v1236, %v1239
    %v1259 = vsel %vm1249, %v1245, 1326507024
    %v1260 = vsel %vm1248, %v1242, %v1259
    %v1261 = vsel %vm1247, %v1258, %v1260
    %v1262 = vshll.u32 %v1222, 8
    %v1263 = vmul.u32.u64.compose %v1262, %v1261
    %v1264 = vextract.low.u32 %v1263
    %v1265 = vextract.high.u32 %v1263
    %v1266 = vmul.u32.u64.compose %v1262, %v1257
    %v1267 = vextract.low.u32 %v1266
    %v1268 = vextract.high.u32 %v1266
    %v1269 = vmul.u32 %v1262, %v1253
    %v1270 = vadd.s32 %v1265, %v1267
    %vm1271 = vc.u32 %v1265, %v1267
    %v1272 = vadd.s32 %v1268, 1
    %v1273 = vsel %vm1271, %v1272, %v1268
    %v1274 = vadd.s32 %v1269, %v1273
    %v1275 = vadd.s32 %v1274, 536870912
    %v1276 = vshrl.u32 %v1275, 30
    %v1277 = vshll.u32 %v1276, 30
    %v1278 = vsub.s32 %v1274, %v1277
    %vm1279 = vcmp.lt.s32.totalorder %v1278, 0
    %v1280 = vsub.s32 0, %v1278
    %v1281 = vsel %vm1279, %v1280, %v1278
    %v1282 = vclz %v1281
    %v1283 = vsub.s32 %v1282, 2
    %vm1284 = vcmp.gt.s32.totalorder 0, %v1283
    %v1285 = vsel %vm1284, 0, %v1283
    %v1286 = vsub.s32 32, %v1285
    %v1287 = vshll.u32 %v1278, %v1285
    %v1288 = vshrl.u32 %v1270, %v1286
    %v1289 = vor.u32 %v1287, %v1288
    %v1290 = vsub.s32 4294967266, %v1285
    %v1291 = vadd.s32 %v1290, 127
    %v1292 = vshll.u32 %v1291, 23
    %v1293 = vor.u32 4788187, %v1292
    %v1294 = vand.u32 2147483647, %v1293
    %v1296 = vcvt.s32.f32 %v1289
    %v1297 = vmul.f32 %v1296, %v1294
    %v1298 = vxor.u32 %v1297, 2147483648
    %v1299 = vsel %vm1216, %v1298, %v1297
    %v1300 = vsub.s32 4, %v1276
    %v1301 = vsel %vm1216, %v1300, %v1276
    %v1302 = vsel %vm1215, %v866, %v1299
    %v1303 = vsel %vm1215, 0, %v1301
    %v1304 = vcosq.f32.pop %v1302
    %v1305 = vsinq.f32.pop %v1302
    %vm1306 = vweird.f32 %v866
    %v1307 = vand.u32 %v1303, 3
    %vm1308 = vcmp.lt.s32.totalorder %v1307, 2
    %vm1309 = vcmp.eq.s32.totalorder %v1307, 0
    %v1310 = vxor.u32 %v1305, 2147483648
    %v1311 = vsel %vm1309, %v1304, %v1310
    %vm1312 = vcmp.eq.s32.totalorder %v1307, 2
    %v1313 = vxor.u32 %v1304, 2147483648
    %v1314 = vsel %vm1312, %v1313, %v1305
    %v1315 = vsel %vm1308, %v1311, %v1314
    %v1316 = vsel %vm1306, nan, %v1315
    %v1317 = vand.u32 2147483647, %v872
    %vm1318 = vcmp.le.f32.partialorder %v1317, 0.7853982
    %vm1319 = vcmp.lt.s32.totalorder %v872, 0
    %v1320 = vand.u32 %v872, 2139095040
    %v1321 = vshrl.u32 %v1320, 23
    %v1322 = vsub.s32 %v1321, 127
    %v1323 = vand.u32 2147483647, %v872
    %v1324 = vand.u32 %v1323, 8388607
    %v1325 = vor.u32 %v1324, 8388608
    %v1326 = vsub.s32 0, %v1325
    %v1327 = vadd.s32 %v1322, 1
    %vm1328 = vcmp.gt.s32.totalorder %v1327, 0
    %v1329 = vsel %vm1328, %v1327, 0
    %v1330 = vshrl.u32 %v1329, 5
    %v1331 = vand.u32 %v1329, 31
    %v1332 = vsub.s32 32, %v1331
    %v1333 = vshrl.u32 683565275, %v1332
    %v1334 = vshll.u32 683565275, %v1331
    %v1335 = vshrl.u32 2475754826, %v1332
    %v1336 = vor.u32 %v1334, %v1335
    %v1337 = vshll.u32 2475754826, %v1331
    %v1338 = vshrl.u32 2131351028, %v1332
    %v1339 = vor.u32 %v1337, %v1338
    %v1340 = vshll.u32 2131351028, %v1331
    %v1341 = vshrl.u32 2102212464, %v1332
    %v1342 = vor.u32 %v1340, %v1341
    %v1343 = vshll.u32 2102212464, %v1331
    %v1344 = vshrl.u32 920167782, %v1332
    %v1345 = vor.u32 %v1343, %v1344
    %v1346 = vshll.u32 920167782, %v1331
    %v1347 = vshrl.u32 1326507024, %v1332
    %v1348 = vor.u32 %v1346, %v1347
    %vm1349 = vcmp.lt.s32.totalorder %v1330, 1
    %vm1350 = vcmp.lt.s32.totalorder %v1330, 2
    %vm1351 = vcmp.lt.s32.totalorder %v1330, 3
    %vm1352 = vcmp.lt.s32.totalorder %v1330, 4
    %v1353 = vsel %vm1349, %v1333, %v1336
    %v1354 = vsel %vm1352, %v1342, 2102212464
    %v1355 = vsel %vm1351, %v1339, %v1354
    %v1356 = vsel %vm1350, %v1353, %v1355
    %v1357 = vsel %vm1349, %v1336, %v1339
    %v1358 = vsel %vm1352, %v1345, 920167782
    %v1359 = vsel %vm1351, %v1342, %v1358
    %v1360 = vsel %vm1350, %v1357, %v1359
    %v1361 = vsel %vm1349, %v1339, %v1342
    %v1362 = vsel %vm1352, %v1348, 1326507024
    %v1363 = vsel %vm1351, %v1345, %v1362
    %v1364 = vsel %vm1350, %v1361, %v1363
    %v1365 = vshll.u32 %v1325, 8
    %v1366 = vmul.u32.u64.compose %v1365, %v1364
    %v1367 = vextract.low.u32 %v1366
    %v1368 = vextract.high.u32 %v1366
    %v1369 = vmul.u32.u64.compose %v1365, %v1360
    %v1370 = vextract.low.u32 %v1369
    %v1371 = vextract.high.u32 %v1369
    %v1372 = vmul.u32 %v1365, %v1356
    %v1373 = vadd.s32 %v1368, %v1370
    %vm1374 = vc.u32 %v1368, %v1370
    %v1375 = vadd.s32 %v1371, 1
    %v1376 = vsel %vm1374, %v1375, %v1371
    %v1377 = vadd.s32 %v1372, %v1376
    %v1378 = vadd.s32 %v1377, 536870912
    %v1379 = vshrl.u32 %v1378, 30
    %v1380 = vshll.u32 %v1379, 30
    %v1381 = vsub.s32 %v1377, %v1380
    %vm1382 = vcmp.lt.s32.totalorder %v1381, 0
    %v1383 = vsub.s32 0, %v1381
    %v1384 = vsel %vm1382, %v1383, %v1381
    %v1385 = vclz %v1384
    %v1386 = vsub.s32 %v1385, 2
    %vm1387 = vcmp.gt.s32.totalorder 0, %v1386
    %v1388 = vsel %vm1387, 0, %v1386
    %v1389 = vsub.s32 32, %v1388
    %v1390 = vshll.u32 %v1381, %v1388
    %v1391 = vshrl.u32 %v1373, %v1389
    %v1392 = vor.u32 %v1390, %v1391
    %v1393 = vsub.s32 4294967266, %v1388
    %v1394 = vadd.s32 %v1393, 127
    %v1395 = vshll.u32 %v1394, 23
    %v1396 = vor.u32 4788187, %v1395
    %v1397 = vand.u32 2147483647, %v1396
    %v1399 = vcvt.s32.f32 %v1392
    %v1400 = vmul.f32 %v1399, %v1397
    %v1401 = vxor.u32 %v1400, 2147483648
    %v1402 = vsel %vm1319, %v1401, %v1400
    %v1403 = vsub.s32 4, %v1379
    %v1404 = vsel %vm1319, %v1403, %v1379
    %v1405 = vsel %vm1318, %v872, %v1402
    %v1406 = vsel %vm1318, 0, %v1404
    %v1407 = vcosq.f32.pop %v1405
    %v1408 = vsinq.f32.pop %v1405
    %vm1409 = vweird.f32 %v872
    %v1410 = vand.u32 %v1406, 3
    %vm1411 = vcmp.lt.s32.totalorder %v1410, 2
    %vm1412 = vcmp.eq.s32.totalorder %v1410, 0
    %v1413 = vxor.u32 %v1408, 2147483648
    %v1414 = vsel %vm1412, %v1407, %v1413
    %vm1415 = vcmp.eq.s32.totalorder %v1410, 2
    %v1416 = vxor.u32 %v1407, 2147483648
    %v1417 = vsel %vm1415, %v1416, %v1408
    %v1418 = vsel %vm1411, %v1414, %v1417
    %v1419 = vsel %vm1409, nan, %v1418
    %v1420 = vand.u32 2147483647, %v878
    %vm1421 = vcmp.le.f32.partialorder %v1420, 0.7853982
    %vm1422 = vcmp.lt.s32.totalorder %v878, 0
    %v1423 = vand.u32 %v878, 2139095040
    %v1424 = vshrl.u32 %v1423, 23
    %v1425 = vsub.s32 %v1424, 127
    %v1426 = vand.u32 2147483647, %v878
    %v1427 = vand.u32 %v1426, 8388607
    %v1428 = vor.u32 %v1427, 8388608
    %v1429 = vsub.s32 0, %v1428
    %v1430 = vadd.s32 %v1425, 1
    %vm1431 = vcmp.gt.s32.totalorder %v1430, 0
    %v1432 = vsel %vm1431, %v1430, 0
    %v1433 = vshrl.u32 %v1432, 5
    %v1434 = vand.u32 %v1432, 31
    %v1435 = vsub.s32 32, %v1434
    %v1436 = vshrl.u32 683565275, %v1435
    %v1437 = vshll.u32 683565275, %v1434
    %v1438 = vshrl.u32 2475754826, %v1435
    %v1439 = vor.u32 %v1437, %v1438
    %v1440 = vshll.u32 2475754826, %v1434
    %v1441 = vshrl.u32 2131351028, %v1435
    %v1442 = vor.u32 %v1440, %v1441
    %v1443 = vshll.u32 2131351028, %v1434
    %v1444 = vshrl.u32 2102212464, %v1435
    %v1445 = vor.u32 %v1443, %v1444
    %v1446 = vshll.u32 2102212464, %v1434
    %v1447 = vshrl.u32 920167782, %v1435
    %v1448 = vor.u32 %v1446, %v1447
    %v1449 = vshll.u32 920167782, %v1434
    %v1450 = vshrl.u32 1326507024, %v1435
    %v1451 = vor.u32 %v1449, %v1450
    %vm1452 = vcmp.lt.s32.totalorder %v1433, 1
    %vm1453 = vcmp.lt.s32.totalorder %v1433, 2
    %vm1454 = vcmp.lt.s32.totalorder %v1433, 3
    %vm1455 = vcmp.lt.s32.totalorder %v1433, 4
    %v1456 = vsel %vm1452, %v1436, %v1439
    %v1457 = vsel %vm1455, %v1445, 2102212464
    %v1458 = vsel %vm1454, %v1442, %v1457
    %v1459 = vsel %vm1453, %v1456, %v1458
    %v1460 = vsel %vm1452, %v1439, %v1442
    %v1461 = vsel %vm1455, %v1448, 920167782
    %v1462 = vsel %vm1454, %v1445, %v1461
    %v1463 = vsel %vm1453, %v1460, %v1462
    %v1464 = vsel %vm1452, %v1442, %v1445
    %v1465 = vsel %vm1455, %v1451, 1326507024
    %v1466 = vsel %vm1454, %v1448, %v1465
    %v1467 = vsel %vm1453, %v1464, %v1466
    %v1468 = vshll.u32 %v1428, 8
    %v1469 = vmul.u32.u64.compose %v1468, %v1467
    %v1470 = vextract.low.u32 %v1469
    %v1471 = vextract.high.u32 %v1469
    %v1472 = vmul.u32.u64.compose %v1468, %v1463
    %v1473 = vextract.low.u32 %v1472
    %v1474 = vextract.high.u32 %v1472
    %v1475 = vmul.u32 %v1468, %v1459
    %v1476 = vadd.s32 %v1471, %v1473
    %vm1477 = vc.u32 %v1471, %v1473
    %v1478 = vadd.s32 %v1474, 1
    %v1479 = vsel %vm1477, %v1478, %v1474
    %v1480 = vadd.s32 %v1475, %v1479
    %v1481 = vadd.s32 %v1480, 536870912
    %v1482 = vshrl.u32 %v1481, 30
    %v1483 = vshll.u32 %v1482, 30
    %v1484 = vsub.s32 %v1480, %v1483
    %vm1485 = vcmp.lt.s32.totalorder %v1484, 0
    %v1486 = vsub.s32 0, %v1484
    %v1487 = vsel %vm1485, %v1486, %v1484
    %v1488 = vclz %v1487
    %v1489 = vsub.s32 %v1488, 2
    %vm1490 = vcmp.gt.s32.totalorder 0, %v1489
    %v1491 = vsel %vm1490, 0, %v1489
    %v1492 = vsub.s32 32, %v1491
    %v1493 = vshll.u32 %v1484, %v1491
    %v1494 = vshrl.u32 %v1476, %v1492
    %v1495 = vor.u32 %v1493, %v1494
    %v1496 = vsub.s32 4294967266, %v1491
    %v1497 = vadd.s32 %v1496, 127
    %v1498 = vshll.u32 %v1497, 23
    %v1499 = vor.u32 4788187, %v1498
    %v1500 = vand.u32 2147483647, %v1499
    %v1502 = vcvt.s32.f32 %v1495
    %v1503 = vmul.f32 %v1502, %v1500
    %v1504 = vxor.u32 %v1503, 2147483648
    %v1505 = vsel %vm1422, %v1504, %v1503
    %v1506 = vsub.s32 4, %v1482
    %v1507 = vsel %vm1422, %v1506, %v1482
    %v1508 = vsel %vm1421, %v878, %v1505
    %v1509 = vsel %vm1421, 0, %v1507
    %v1510 = vcosq.f32.pop %v1508
    %v1511 = vsinq.f32.pop %v1508
    %vm1512 = vweird.f32 %v878
    %v1513 = vand.u32 %v1509, 3
    %vm1514 = vcmp.lt.s32.totalorder %v1513, 2
    %vm1515 = vcmp.eq.s32.totalorder %v1513, 0
    %v1516 = vxor.u32 %v1511, 2147483648
    %v1517 = vsel %vm1515, %v1510, %v1516
    %vm1518 = vcmp.eq.s32.totalorder %v1513, 2
    %v1519 = vxor.u32 %v1510, 2147483648
    %v1520 = vsel %vm1518, %v1519, %v1511
    %v1521 = vsel %vm1514, %v1517, %v1520
    %v1522 = vsel %vm1512, nan, %v1521
    %v1523 = vand.u32 2147483647, %v884
    %vm1524 = vcmp.le.f32.partialorder %v1523, 0.7853982
    %vm1525 = vcmp.lt.s32.totalorder %v884, 0
    %v1526 = vand.u32 %v884, 2139095040
    %v1527 = vshrl.u32 %v1526, 23
    %v1528 = vsub.s32 %v1527, 127
    %v1529 = vand.u32 2147483647, %v884
    %v1530 = vand.u32 %v1529, 8388607
    %v1531 = vor.u32 %v1530, 8388608
    %v1532 = vsub.s32 0, %v1531
    %v1533 = vadd.s32 %v1528, 1
    %vm1534 = vcmp.gt.s32.totalorder %v1533, 0
    %v1535 = vsel %vm1534, %v1533, 0
    %v1536 = vshrl.u32 %v1535, 5
    %v1537 = vand.u32 %v1535, 31
    %v1538 = vsub.s32 32, %v1537
    %v1539 = vshrl.u32 683565275, %v1538
    %v1540 = vshll.u32 683565275, %v1537
    %v1541 = vshrl.u32 2475754826, %v1538
    %v1542 = vor.u32 %v1540, %v1541
    %v1543 = vshll.u32 2475754826, %v1537
    %v1544 = vshrl.u32 2131351028, %v1538
    %v1545 = vor.u32 %v1543, %v1544
    %v1546 = vshll.u32 2131351028, %v1537
    %v1547 = vshrl.u32 2102212464, %v1538
    %v1548 = vor.u32 %v1546, %v1547
    %v1549 = vshll.u32 2102212464, %v1537
    %v1550 = vshrl.u32 920167782, %v1538
    %v1551 = vor.u32 %v1549, %v1550
    %v1552 = vshll.u32 920167782, %v1537
    %v1553 = vshrl.u32 1326507024, %v1538
    %v1554 = vor.u32 %v1552, %v1553
    %vm1555 = vcmp.lt.s32.totalorder %v1536, 1
    %vm1556 = vcmp.lt.s32.totalorder %v1536, 2
    %vm1557 = vcmp.lt.s32.totalorder %v1536, 3
    %vm1558 = vcmp.lt.s32.totalorder %v1536, 4
    %v1559 = vsel %vm1555, %v1539, %v1542
    %v1560 = vsel %vm1558, %v1548, 2102212464
    %v1561 = vsel %vm1557, %v1545, %v1560
    %v1562 = vsel %vm1556, %v1559, %v1561
    %v1563 = vsel %vm1555, %v1542, %v1545
    %v1564 = vsel %vm1558, %v1551, 920167782
    %v1565 = vsel %vm1557, %v1548, %v1564
    %v1566 = vsel %vm1556, %v1563, %v1565
    %v1567 = vsel %vm1555, %v1545, %v1548
    %v1568 = vsel %vm1558, %v1554, 1326507024
    %v1569 = vsel %vm1557, %v1551, %v1568
    %v1570 = vsel %vm1556, %v1567, %v1569
    %v1571 = vshll.u32 %v1531, 8
    %v1572 = vmul.u32.u64.compose %v1571, %v1570
    %v1573 = vextract.low.u32 %v1572
    %v1574 = vextract.high.u32 %v1572
    %v1575 = vmul.u32.u64.compose %v1571, %v1566
    %v1576 = vextract.low.u32 %v1575
    %v1577 = vextract.high.u32 %v1575
    %v1578 = vmul.u32 %v1571, %v1562
    %v1579 = vadd.s32 %v1574, %v1576
    %vm1580 = vc.u32 %v1574, %v1576
    %v1581 = vadd.s32 %v1577, 1
    %v1582 = vsel %vm1580, %v1581, %v1577
    %v1583 = vadd.s32 %v1578, %v1582
    %v1584 = vadd.s32 %v1583, 536870912
    %v1585 = vshrl.u32 %v1584, 30
    %v1586 = vshll.u32 %v1585, 30
    %v1587 = vsub.s32 %v1583, %v1586
    %vm1588 = vcmp.lt.s32.totalorder %v1587, 0
    %v1589 = vsub.s32 0, %v1587
    %v1590 = vsel %vm1588, %v1589, %v1587
    %v1591 = vclz %v1590
    %v1592 = vsub.s32 %v1591, 2
    %vm1593 = vcmp.gt.s32.totalorder 0, %v1592
    %v1594 = vsel %vm1593, 0, %v1592
    %v1595 = vsub.s32 32, %v1594
    %v1596 = vshll.u32 %v1587, %v1594
    %v1597 = vshrl.u32 %v1579, %v1595
    %v1598 = vor.u32 %v1596, %v1597
    %v1599 = vsub.s32 4294967266, %v1594
    %v1600 = vadd.s32 %v1599, 127
    %v1601 = vshll.u32 %v1600, 23
    %v1602 = vor.u32 4788187, %v1601
    %v1603 = vand.u32 2147483647, %v1602
    %v1605 = vcvt.s32.f32 %v1598
    %v1606 = vmul.f32 %v1605, %v1603
    %v1607 = vxor.u32 %v1606, 2147483648
    %v1608 = vsel %vm1525, %v1607, %v1606
    %v1609 = vsub.s32 4, %v1585
    %v1610 = vsel %vm1525, %v1609, %v1585
    %v1611 = vsel %vm1524, %v884, %v1608
    %v1612 = vsel %vm1524, 0, %v1610
    %v1613 = vcosq.f32.pop %v1611
    %v1614 = vsinq.f32.pop %v1611
    %vm1615 = vweird.f32 %v884
    %v1616 = vand.u32 %v1612, 3
    %vm1617 = vcmp.lt.s32.totalorder %v1616, 2
    %vm1618 = vcmp.eq.s32.totalorder %v1616, 0
    %v1619 = vxor.u32 %v1614, 2147483648
    %v1620 = vsel %vm1618, %v1613, %v1619
    %vm1621 = vcmp.eq.s32.totalorder %v1616, 2
    %v1622 = vxor.u32 %v1613, 2147483648
    %v1623 = vsel %vm1621, %v1622, %v1614
    %v1624 = vsel %vm1617, %v1620, %v1623
    %v1625 = vsel %vm1615, nan, %v1624
    %v1626 = vand.u32 2147483647, %v890
    %vm1627 = vcmp.le.f32.partialorder %v1626, 0.7853982
    %vm1628 = vcmp.lt.s32.totalorder %v890, 0
    %v1629 = vand.u32 %v890, 2139095040
    %v1630 = vshrl.u32 %v1629, 23
    %v1631 = vsub.s32 %v1630, 127
    %v1632 = vand.u32 2147483647, %v890
    %v1633 = vand.u32 %v1632, 8388607
    %v1634 = vor.u32 %v1633, 8388608
    %v1635 = vsub.s32 0, %v1634
    %v1636 = vadd.s32 %v1631, 1
    %vm1637 = vcmp.gt.s32.totalorder %v1636, 0
    %v1638 = vsel %vm1637, %v1636, 0
    %v1639 = vshrl.u32 %v1638, 5
    %v1640 = vand.u32 %v1638, 31
    %v1641 = vsub.s32 32, %v1640
    %v1642 = vshrl.u32 683565275, %v1641
    %v1643 = vshll.u32 683565275, %v1640
    %v1644 = vshrl.u32 2475754826, %v1641
    %v1645 = vor.u32 %v1643, %v1644
    %v1646 = vshll.u32 2475754826, %v1640
    %v1647 = vshrl.u32 2131351028, %v1641
    %v1648 = vor.u32 %v1646, %v1647
    %v1649 = vshll.u32 2131351028, %v1640
    %v1650 = vshrl.u32 2102212464, %v1641
    %v1651 = vor.u32 %v1649, %v1650
    %v1652 = vshll.u32 2102212464, %v1640
    %v1653 = vshrl.u32 920167782, %v1641
    %v1654 = vor.u32 %v1652, %v1653
    %v1655 = vshll.u32 920167782, %v1640
    %v1656 = vshrl.u32 1326507024, %v1641
    %v1657 = vor.u32 %v1655, %v1656
    %vm1658 = vcmp.lt.s32.totalorder %v1639, 1
    %vm1659 = vcmp.lt.s32.totalorder %v1639, 2
    %vm1660 = vcmp.lt.s32.totalorder %v1639, 3
    %vm1661 = vcmp.lt.s32.totalorder %v1639, 4
    %v1662 = vsel %vm1658, %v1642, %v1645
    %v1663 = vsel %vm1661, %v1651, 2102212464
    %v1664 = vsel %vm1660, %v1648, %v1663
    %v1665 = vsel %vm1659, %v1662, %v1664
    %v1666 = vsel %vm1658, %v1645, %v1648
    %v1667 = vsel %vm1661, %v1654, 920167782
    %v1668 = vsel %vm1660, %v1651, %v1667
    %v1669 = vsel %vm1659, %v1666, %v1668
    %v1670 = vsel %vm1658, %v1648, %v1651
    %v1671 = vsel %vm1661, %v1657, 1326507024
    %v1672 = vsel %vm1660, %v1654, %v1671
    %v1673 = vsel %vm1659, %v1670, %v1672
    %v1674 = vshll.u32 %v1634, 8
    %v1675 = vmul.u32.u64.compose %v1674, %v1673
    %v1676 = vextract.low.u32 %v1675
    %v1677 = vextract.high.u32 %v1675
    %v1678 = vmul.u32.u64.compose %v1674, %v1669
    %v1679 = vextract.low.u32 %v1678
    %v1680 = vextract.high.u32 %v1678
    %v1681 = vmul.u32 %v1674, %v1665
    %v1682 = vadd.s32 %v1677, %v1679
    %vm1683 = vc.u32 %v1677, %v1679
    %v1684 = vadd.s32 %v1680, 1
    %v1685 = vsel %vm1683, %v1684, %v1680
    %v1686 = vadd.s32 %v1681, %v1685
    %v1687 = vadd.s32 %v1686, 536870912
    %v1688 = vshrl.u32 %v1687, 30
    %v1689 = vshll.u32 %v1688, 30
    %v1690 = vsub.s32 %v1686, %v1689
    %vm1691 = vcmp.lt.s32.totalorder %v1690, 0
    %v1692 = vsub.s32 0, %v1690
    %v1693 = vsel %vm1691, %v1692, %v1690
    %v1694 = vclz %v1693
    %v1695 = vsub.s32 %v1694, 2
    %vm1696 = vcmp.gt.s32.totalorder 0, %v1695
    %v1697 = vsel %vm1696, 0, %v1695
    %v1698 = vsub.s32 32, %v1697
    %v1699 = vshll.u32 %v1690, %v1697
    %v1700 = vshrl.u32 %v1682, %v1698
    %v1701 = vor.u32 %v1699, %v1700
    %v1702 = vsub.s32 4294967266, %v1697
    %v1703 = vadd.s32 %v1702, 127
    %v1704 = vshll.u32 %v1703, 23
    %v1705 = vor.u32 4788187, %v1704
    %v1706 = vand.u32 2147483647, %v1705
    %v1708 = vcvt.s32.f32 %v1701
    %v1709 = vmul.f32 %v1708, %v1706
    %v1710 = vxor.u32 %v1709, 2147483648
    %v1711 = vsel %vm1628, %v1710, %v1709
    %v1712 = vsub.s32 4, %v1688
    %v1713 = vsel %vm1628, %v1712, %v1688
    %v1714 = vsel %vm1627, %v890, %v1711
    %v1715 = vsel %vm1627, 0, %v1713
    %v1716 = vcosq.f32.pop %v1714
    %v1717 = vsinq.f32.pop %v1714
    %vm1718 = vweird.f32 %v890
    %v1719 = vand.u32 %v1715, 3
    %vm1720 = vcmp.lt.s32.totalorder %v1719, 2
    %vm1721 = vcmp.eq.s32.totalorder %v1719, 0
    %v1722 = vxor.u32 %v1717, 2147483648
    %v1723 = vsel %vm1721, %v1716, %v1722
    %vm1724 = vcmp.eq.s32.totalorder %v1719, 2
    %v1725 = vxor.u32 %v1716, 2147483648
    %v1726 = vsel %vm1724, %v1725, %v1717
    %v1727 = vsel %vm1720, %v1723, %v1726
    %v1728 = vsel %vm1718, nan, %v1727
    %v1729 = vand.u32 2147483647, %v896
    %vm1730 = vcmp.le.f32.partialorder %v1729, 0.7853982
    %vm1731 = vcmp.lt.s32.totalorder %v896, 0
    %v1732 = vand.u32 %v896, 2139095040
    %v1733 = vshrl.u32 %v1732, 23
    %v1734 = vsub.s32 %v1733, 127
    %v1735 = vand.u32 2147483647, %v896
    %v1736 = vand.u32 %v1735, 8388607
    %v1737 = vor.u32 %v1736, 8388608
    %v1738 = vsub.s32 0, %v1737
    %v1739 = vadd.s32 %v1734, 1
    %vm1740 = vcmp.gt.s32.totalorder %v1739, 0
    %v1741 = vsel %vm1740, %v1739, 0
    %v1742 = vshrl.u32 %v1741, 5
    %v1743 = vand.u32 %v1741, 31
    %v1744 = vsub.s32 32, %v1743
    %v1745 = vshrl.u32 683565275, %v1744
    %v1746 = vshll.u32 683565275, %v1743
    %v1747 = vshrl.u32 2475754826, %v1744
    %v1748 = vor.u32 %v1746, %v1747
    %v1749 = vshll.u32 2475754826, %v1743
    %v1750 = vshrl.u32 2131351028, %v1744
    %v1751 = vor.u32 %v1749, %v1750
    %v1752 = vshll.u32 2131351028, %v1743
    %v1753 = vshrl.u32 2102212464, %v1744
    %v1754 = vor.u32 %v1752, %v1753
    %v1755 = vshll.u32 2102212464, %v1743
    %v1756 = vshrl.u32 920167782, %v1744
    %v1757 = vor.u32 %v1755, %v1756
    %v1758 = vshll.u32 920167782, %v1743
    %v1759 = vshrl.u32 1326507024, %v1744
    %v1760 = vor.u32 %v1758, %v1759
    %vm1761 = vcmp.lt.s32.totalorder %v1742, 1
    %vm1762 = vcmp.lt.s32.totalorder %v1742, 2
    %vm1763 = vcmp.lt.s32.totalorder %v1742, 3
    %vm1764 = vcmp.lt.s32.totalorder %v1742, 4
    %v1765 = vsel %vm1761, %v1745, %v1748
    %v1766 = vsel %vm1764, %v1754, 2102212464
    %v1767 = vsel %vm1763, %v1751, %v1766
    %v1768 = vsel %vm1762, %v1765, %v1767
    %v1769 = vsel %vm1761, %v1748, %v1751
    %v1770 = vsel %vm1764, %v1757, 920167782
    %v1771 = vsel %vm1763, %v1754, %v1770
    %v1772 = vsel %vm1762, %v1769, %v1771
    %v1773 = vsel %vm1761, %v1751, %v1754
    %v1774 = vsel %vm1764, %v1760, 1326507024
    %v1775 = vsel %vm1763, %v1757, %v1774
    %v1776 = vsel %vm1762, %v1773, %v1775
    %v1777 = vshll.u32 %v1737, 8
    %v1778 = vmul.u32.u64.compose %v1777, %v1776
    %v1779 = vextract.low.u32 %v1778
    %v1780 = vextract.high.u32 %v1778
    %v1781 = vmul.u32.u64.compose %v1777, %v1772
    %v1782 = vextract.low.u32 %v1781
    %v1783 = vextract.high.u32 %v1781
    %v1784 = vmul.u32 %v1777, %v1768
    %v1785 = vadd.s32 %v1780, %v1782
    %vm1786 = vc.u32 %v1780, %v1782
    %v1787 = vadd.s32 %v1783, 1
    %v1788 = vsel %vm1786, %v1787, %v1783
    %v1789 = vadd.s32 %v1784, %v1788
    %v1790 = vadd.s32 %v1789, 536870912
    %v1791 = vshrl.u32 %v1790, 30
    %v1792 = vshll.u32 %v1791, 30
    %v1793 = vsub.s32 %v1789, %v1792
    %vm1794 = vcmp.lt.s32.totalorder %v1793, 0
    %v1795 = vsub.s32 0, %v1793
    %v1796 = vsel %vm1794, %v1795, %v1793
    %v1797 = vclz %v1796
    %v1798 = vsub.s32 %v1797, 2
    %vm1799 = vcmp.gt.s32.totalorder 0, %v1798
    %v1800 = vsel %vm1799, 0, %v1798
    %v1801 = vsub.s32 32, %v1800
    %v1802 = vshll.u32 %v1793, %v1800
    %v1803 = vshrl.u32 %v1785, %v1801
    %v1804 = vor.u32 %v1802, %v1803
    %v1805 = vsub.s32 4294967266, %v1800
    %v1806 = vadd.s32 %v1805, 127
    %v1807 = vshll.u32 %v1806, 23
    %v1808 = vor.u32 4788187, %v1807
    %v1809 = vand.u32 2147483647, %v1808
    %v1811 = vcvt.s32.f32 %v1804
    %v1812 = vmul.f32 %v1811, %v1809
    %v1813 = vxor.u32 %v1812, 2147483648
    %v1814 = vsel %vm1731, %v1813, %v1812
    %v1815 = vsub.s32 4, %v1791
    %v1816 = vsel %vm1731, %v1815, %v1791
    %v1817 = vsel %vm1730, %v896, %v1814
    %v1818 = vsel %vm1730, 0, %v1816
    %v1819 = vcosq.f32.pop %v1817
    %v1820 = vsinq.f32.pop %v1817
    %vm1821 = vweird.f32 %v896
    %v1822 = vand.u32 %v1818, 3
    %vm1823 = vcmp.lt.s32.totalorder %v1822, 2
    %vm1824 = vcmp.eq.s32.totalorder %v1822, 0
    %v1825 = vxor.u32 %v1820, 2147483648
    %v1826 = vsel %vm1824, %v1819, %v1825
    %vm1827 = vcmp.eq.s32.totalorder %v1822, 2
    %v1828 = vxor.u32 %v1819, 2147483648
    %v1829 = vsel %vm1827, %v1828, %v1820
    %v1830 = vsel %vm1823, %v1826, %v1829
    %v1831 = vsel %vm1821, nan, %v1830
    %v1832 = vand.u32 2147483647, %v902
    %vm1833 = vcmp.le.f32.partialorder %v1832, 0.7853982
    %vm1834 = vcmp.lt.s32.totalorder %v902, 0
    %v1835 = vand.u32 %v902, 2139095040
    %v1836 = vshrl.u32 %v1835, 23
    %v1837 = vsub.s32 %v1836, 127
    %v1838 = vand.u32 2147483647, %v902
    %v1839 = vand.u32 %v1838, 8388607
    %v1840 = vor.u32 %v1839, 8388608
    %v1841 = vsub.s32 0, %v1840
    %v1842 = vadd.s32 %v1837, 1
    %vm1843 = vcmp.gt.s32.totalorder %v1842, 0
    %v1844 = vsel %vm1843, %v1842, 0
    %v1845 = vshrl.u32 %v1844, 5
    %v1846 = vand.u32 %v1844, 31
    %v1847 = vsub.s32 32, %v1846
    %v1848 = vshrl.u32 683565275, %v1847
    %v1849 = vshll.u32 683565275, %v1846
    %v1850 = vshrl.u32 2475754826, %v1847
    %v1851 = vor.u32 %v1849, %v1850
    %v1852 = vshll.u32 2475754826, %v1846
    %v1853 = vshrl.u32 2131351028, %v1847
    %v1854 = vor.u32 %v1852, %v1853
    %v1855 = vshll.u32 2131351028, %v1846
    %v1856 = vshrl.u32 2102212464, %v1847
    %v1857 = vor.u32 %v1855, %v1856
    %v1858 = vshll.u32 2102212464, %v1846
    %v1859 = vshrl.u32 920167782, %v1847
    %v1860 = vor.u32 %v1858, %v1859
    %v1861 = vshll.u32 920167782, %v1846
    %v1862 = vshrl.u32 1326507024, %v1847
    %v1863 = vor.u32 %v1861, %v1862
    %vm1864 = vcmp.lt.s32.totalorder %v1845, 1
    %vm1865 = vcmp.lt.s32.totalorder %v1845, 2
    %vm1866 = vcmp.lt.s32.totalorder %v1845, 3
    %vm1867 = vcmp.lt.s32.totalorder %v1845, 4
    %v1868 = vsel %vm1864, %v1848, %v1851
    %v1869 = vsel %vm1867, %v1857, 2102212464
    %v1870 = vsel %vm1866, %v1854, %v1869
    %v1871 = vsel %vm1865, %v1868, %v1870
    %v1872 = vsel %vm1864, %v1851, %v1854
    %v1873 = vsel %vm1867, %v1860, 920167782
    %v1874 = vsel %vm1866, %v1857, %v1873
    %v1875 = vsel %vm1865, %v1872, %v1874
    %v1876 = vsel %vm1864, %v1854, %v1857
    %v1877 = vsel %vm1867, %v1863, 1326507024
    %v1878 = vsel %vm1866, %v1860, %v1877
    %v1879 = vsel %vm1865, %v1876, %v1878
    %v1880 = vshll.u32 %v1840, 8
    %v1881 = vmul.u32.u64.compose %v1880, %v1879
    %v1882 = vextract.low.u32 %v1881
    %v1883 = vextract.high.u32 %v1881
    %v1884 = vmul.u32.u64.compose %v1880, %v1875
    %v1885 = vextract.low.u32 %v1884
    %v1886 = vextract.high.u32 %v1884
    %v1887 = vmul.u32 %v1880, %v1871
    %v1888 = vadd.s32 %v1883, %v1885
    %vm1889 = vc.u32 %v1883, %v1885
    %v1890 = vadd.s32 %v1886, 1
    %v1891 = vsel %vm1889, %v1890, %v1886
    %v1892 = vadd.s32 %v1887, %v1891
    %v1893 = vadd.s32 %v1892, 536870912
    %v1894 = vshrl.u32 %v1893, 30
    %v1895 = vshll.u32 %v1894, 30
    %v1896 = vsub.s32 %v1892, %v1895
    %vm1897 = vcmp.lt.s32.totalorder %v1896, 0
    %v1898 = vsub.s32 0, %v1896
    %v1899 = vsel %vm1897, %v1898, %v1896
    %v1900 = vclz %v1899
    %v1901 = vsub.s32 %v1900, 2
    %vm1902 = vcmp.gt.s32.totalorder 0, %v1901
    %v1903 = vsel %vm1902, 0, %v1901
    %v1904 = vsub.s32 32, %v1903
    %v1905 = vshll.u32 %v1896, %v1903
    %v1906 = vshrl.u32 %v1888, %v1904
    %v1907 = vor.u32 %v1905, %v1906
    %v1908 = vsub.s32 4294967266, %v1903
    %v1909 = vadd.s32 %v1908, 127
    %v1910 = vshll.u32 %v1909, 23
    %v1911 = vor.u32 4788187, %v1910
    %v1912 = vand.u32 2147483647, %v1911
    %v1914 = vcvt.s32.f32 %v1907
    %v1915 = vmul.f32 %v1914, %v1912
    %v1916 = vxor.u32 %v1915, 2147483648
    %v1917 = vsel %vm1834, %v1916, %v1915
    %v1918 = vsub.s32 4, %v1894
    %v1919 = vsel %vm1834, %v1918, %v1894
    %v1920 = vsel %vm1833, %v902, %v1917
    %v1921 = vsel %vm1833, 0, %v1919
    %v1922 = vcosq.f32.pop %v1920
    %v1923 = vsinq.f32.pop %v1920
    %vm1924 = vweird.f32 %v902
    %v1925 = vand.u32 %v1921, 3
    %vm1926 = vcmp.lt.s32.totalorder %v1925, 2
    %vm1927 = vcmp.eq.s32.totalorder %v1925, 0
    %v1928 = vxor.u32 %v1923, 2147483648
    %v1929 = vsel %vm1927, %v1922, %v1928
    %vm1930 = vcmp.eq.s32.totalorder %v1925, 2
    %v1931 = vxor.u32 %v1922, 2147483648
    %v1932 = vsel %vm1930, %v1931, %v1923
    %v1933 = vsel %vm1926, %v1929, %v1932
    %v1934 = vsel %vm1924, nan, %v1933
    %1935 = vst [vmem:[#allocation2] sm:$0xff] %v1007
    %1936 = vst [vmem:[#allocation2 + $0x8] sm:$0xff] %v1110
    %1937 = vst [vmem:[#allocation2 + $0x10] sm:$0xff] %v1213
    %1938 = vst [vmem:[#allocation2 + $0x18] sm:$0xff] %v1316
    %1939 = vst [vmem:[#allocation2 + $0x20] sm:$0xff] %v1419
    %1940 = vst [vmem:[#allocation2 + $0x28] sm:$0xff] %v1522
    %1941 = vst [vmem:[#allocation2 + $0x30] sm:$0xff] %v1625
    %1942 = vst [vmem:[#allocation2 + $0x38] sm:$0xff] %v1728
    %1943 = vst [vmem:[#allocation2 + $0x40] sm:$0xff] %v1831
    %1944 = vst [vmem:[#allocation2 + $0x48] sm:$0xff] %v1934
    // Predicated region
    $region10: #{tpu_custom_call.1} parent=1 // pred_check
      _
    $region11: #{tpu_custom_call.1} parent=1 // pred_check_branch
      %1946 = sbr.rel (0) target = $region13
    $region12: #{tpu_custom_call.1} parent=1 // pred_region
      %s1948 = ssub.s32 1280, 1280
      %1949 = vsyncadd [#allocation3], %s1948
      %s1950 = sshll.u32 [#allocation2], 4
      %s1951 = int_to_ptr.vmem [resolvable:$true] %s1950
      %1956 = dma.vmem_to_hbm [thread:$0]  %s1951, 1280, %s2, [#allocation3], 128, 128, 8
    $region13: #{tpu_custom_call.1} parent=1 // pred_fallthru
      _
    // Predicated region
    $region14: #{tpu_custom_call.1} parent=1 // pred_check
      _
    $region15: #{tpu_custom_call.1} parent=1 // pred_check_branch
      %1958 = sbr.rel (0) target = $region17
    $region16: #{tpu_custom_call.1} parent=1 // pred_region
      %1959 = dma.done [#allocation3], 1280
    $region17: #{tpu_custom_call.1} parent=1 // pred_fallthru
      _
    %1960 = vsyncpa [#allocation3], 1

</llo_original>
